<compile_context>
chip_gen: v5e
topology: v5e:2x2
jax: 0.10.0
libtpu: 0.0.40
codegen_flags: <defaults>
</compile_context>

<pallas_src>
import jax
import jax.numpy as jnp
from jax.experimental import pallas as pl
from jax.experimental.pallas import tpu as pltpu


def _round_up(x, m):
    return (x + m - 1) // m * m


def _device_kind():
    try:
        return jax.devices()[0].device_kind.lower()
    except Exception:
        return ""


def _default_tile_n():
    kind = _device_kind()
    if "v6" in kind:
        return 256   # 128 MiB VMEM: bigger tiles amortize per-step overhead, fill the MXU
    return 128       # v5e (128x128 MXU), v7x (64 MiB VMEM per TC) and anything unknown


def _min_grid_steps():
    # v7x has 2 TensorCores per chip; a 1-step "parallel" grid would leave one idle.
    return 2 if "v7" in _device_kind() else 1


def recursion_head_kernel(x_ref,    # (TILE_N, HW, C)  bf16 feature map, C on lanes
                          w1m_ref,  # (C, C)  f32 fc1 rows for the max-pool half (BN1 folded)
                          w1a_ref,  # (C, C)  f32 fc1 rows for the avg-pool half (BN1 folded)
                          b1_ref,   # (1, C)  f32 fc1 bias (BN1 folded)
                          wf_ref,   # (C, Kp) f32 final weight (BN2 folded, K padded to 128)
                          bf_ref,   # (1, Kp) f32 final bias (BN2 folded, padded)
                          out_ref): # (TILE_N, Kp) f32 logits (padded)
    tile_n, hw, c = x_ref.shape

    # --- AdaptiveConcatPool2d: fused global max + avg over HW in one pass -----------
    # Chunk the (sublane) HW axis so every loaded chunk feeds BOTH reductions, i.e.
    # the tile is read from VMEM once.  16 rows = one packed bf16 sublane group.
    chunk = 16
    n_full = hw // chunk

    mx = jnp.full((tile_n, c), -jnp.inf, dtype=jnp.float32)
    sm = jnp.zeros((tile_n, c), dtype=jnp.float32)

    def _accum(blk_bf16, mx, sm):
        blk = blk_bf16.astype(jnp.float32)                # bf16 -> f32 is exact
        return (jnp.maximum(mx, jnp.max(blk, axis=1)),
                sm + jnp.sum(blk, axis=1))

    for ci in range(n_full):                              # hw is static -> short unrolled loop
        mx, sm = _accum(x_ref[:, ci * chunk:(ci + 1) * chunk, :], mx, sm)
    if hw % chunk:                                        # ragged tail (e.g. HW = 7*7 = 49)
        mx, sm = _accum(x_ref[:, n_full * chunk:, :], mx, sm)

    mp = mx
    ap = sm * (1.0 / hw)                                  # divide by the REAL HW, never padded

    # --- concat([mp, ap], 1) @ W1 == mp @ W1[:C] + ap @ W1[C:]  (no lane-axis concat) --
    h = (jnp.dot(mp, w1m_ref[...], preferred_element_type=jnp.float32)
         + jnp.dot(ap, w1a_ref[...], preferred_element_type=jnp.float32)
         + b1_ref[...])
    h = jnp.maximum(h, 0.0)                               # ReLU; Dropout(0.25) = identity in eval

    # --- final Linear (BN2 already folded into wf/bf) --------------------------------
    out_ref[...] = (jnp.dot(h, wf_ref[...], preferred_element_type=jnp.float32)
                    + bf_ref[...])


def prep_head_params(p, num_classes):
    """Fold eval-mode BatchNorms into the adjacent Linears, split w1, pad K.

    Weights stay f32 (BN scale can amplify bf16 rounding); they are tiny vs. the
    feature-map stream.
    """
    c = p["w1"].shape[1]

    # BN1 folded into fc1:  (feat*s1 + t1) @ W1 + b1 = feat @ (diag(s1) W1) + (t1 @ W1 + b1)
    w1f = p["bn1_scale"].reshape(-1, 1) * p["w1"]                # (2C, C)
    b1f = p["b1"] + p["bn1_shift"] @ p["w1"]                     # (1, C)

    # BN2 folded into final: (h*s2 + t2) @ Wf + bf = h @ (diag(s2) Wf) + (t2 @ Wf + bf)
    wff = p["bn2_scale"].reshape(-1, 1) * p["wf"]                # (C, K)
    bff = p["bf"] + p["bn2_shift"] @ p["wf"]                     # (1, K)

    # Pad the class dim to a lane-dense multiple of 128 (unmasked vector stores).
    k = num_classes
    k_pad = _round_up(k, 128)
    wff = jnp.pad(wff, ((0, 0), (0, k_pad - k)))
    bff = jnp.pad(bff, ((0, 0), (0, k_pad - k)))

    return dict(w1_max=w1f[:c], w1_avg=w1f[c:], b1=b1f, wf=wff, bf=bff, k=k)


def _build_call(*, tile_n, hw, c, k_pad, n_pad, single_buffer_weights,
                cost_estimate, vmem_limit_bytes):
    if single_buffer_weights:
        # Constant index_map -> double buffers are pure VMEM waste (~4.25 MiB at C=512).
        resident = dict(pipeline_mode=pl.Buffered(1))
    else:
        resident = {}

    return pl.pallas_call(
        recursion_head_kernel,
        out_shape=jax.ShapeDtypeStruct((n_pad, k_pad), jnp.float32),
        grid_spec=pltpu.PrefetchScalarGridSpec(
            num_scalar_prefetch=0,
            grid=(n_pad // tile_n,),
            in_specs=[
                # feature map: tiled over batch, double-buffered by the pipeline
                pl.BlockSpec((tile_n, hw, c), lambda i: (i, 0, 0)),
                # weights / biases: constant index_map -> DMA'd once, kept resident
                pl.BlockSpec((c, c), lambda i: (0, 0), **resident),
                pl.BlockSpec((c, c), lambda i: (0, 0), **resident),
                pl.BlockSpec((1, c), lambda i: (0, 0), **resident),
                pl.BlockSpec((c, k_pad), lambda i: (0, 0), **resident),
                pl.BlockSpec((1, k_pad), lambda i: (0, 0), **resident),
            ],
            out_specs=pl.BlockSpec((tile_n, k_pad), lambda i: (i, 0)),
        ),
        compiler_params=pltpu.CompilerParams(
            dimension_semantics=("parallel",),        # batch axis: megacore split on v7x
            vmem_limit_bytes=vmem_limit_bytes,
        ),
        cost_estimate=cost_estimate,
    )


def recursion_head(x_feat, prepped, tile_n=None):
    """Run the RecursionNet head.

    x_feat: backbone feature map, either NCHW float (PyTorch layout) or already
    channels-last (N, HW, C).  Prefer channels-last (ideally bf16) from the backbone so
    no extra HBM relayout round-trip is needed here.
    """
    if x_feat.ndim == 4:
        n, c, h, w = x_feat.shape
        hw = h * w
        # Single fused relayout + downcast (reads f32 NCHW once, writes bf16 (N,HW,C)).
        # TODO(synk): emit channels-last directly from the backbone (or use
        # allow_input_fusion) to remove this HBM round-trip entirely.
        x3 = jnp.transpose(x_feat, (0, 2, 3, 1)).reshape(n, hw, c).astype(jnp.bfloat16)
    else:
        n, hw, c = x_feat.shape
        x3 = x_feat.astype(jnp.bfloat16)

    k_pad = prepped["wf"].shape[1]
    k = prepped["k"]

    # --- generation-aware batch tiling -------------------------------------------
    if tile_n is None:
        tile_n = _default_tile_n()
    min_steps = _min_grid_steps()
    # Shrink the tile so small batches still give `min_steps` grid steps (v7x megacore)
    # without over-padding; keep it a multiple of 8 (sublane-aligned output blocks).
    tile_n = max(8, min(tile_n, _round_up(-(-n // min_steps), 8)))
    n_pad = max(_round_up(n, tile_n), min_steps * tile_n)
    if n_pad != n:
        x3 = jnp.pad(x3, ((0, n_pad - n), (0, 0), (0, 0)))
    steps = n_pad // tile_n

    # --- scheduling hints ----------------------------------------------------------
    w_bytes = 4 * (2 * c * c + c + c * k_pad + k_pad)
    x_bytes = n_pad * hw * c * 2
    flops = steps * (2 * tile_n * hw * c                  # fused max+sum pooling
                     + 2 * tile_n * c * (2 * c + k_pad))  # three matmuls
    cost = pl.CostEstimate(flops=int(flops), transcendentals=0,
                           bytes_accessed=int(x_bytes + w_bytes + n_pad * k_pad * 4))

    # VMEM footprint: bf16 x tile (HW padded to 16 sublanes, C to 128 lanes) x 2 buffers
    # + weights (worst case: double-buffered fallback) + double-buffered output tile.
    x_tile_bytes = tile_n * _round_up(hw, 16) * _round_up(c, 128) * 2
    out_tile_bytes = tile_n * k_pad * 4
    est = 2 * x_tile_bytes + 2 * w_bytes + 2 * out_tile_bytes
    vmem_limit = int(min(max(est + (8 << 20), 32 << 20), 64 << 20))  # <=64 MiB: legal everywhere

    args = (x3, prepped["w1_max"], prepped["w1_avg"], prepped["b1"],
            prepped["wf"], prepped["bf"])
    common = dict(tile_n=tile_n, hw=hw, c=c, k_pad=k_pad, n_pad=n_pad,
                  cost_estimate=cost, vmem_limit_bytes=vmem_limit)
    try:
        out = _build_call(single_buffer_weights=True, **common)(*args)
    except Exception:
        # pl.Buffered(1) not supported by this jax/Mosaic version -> fall back to the
        # default double-buffered weights (correct; ~4 MiB extra VMEM at C=512).
        out = _build_call(single_buffer_weights=False, **common)(*args)

    return out[:n, :k]


def init_params(key, c_feat, num_classes):
    """Deterministic parameter init mirroring RecursionNet._init_params() (eval mode)."""
    k1, k2, k3, k4, k5, k6, k7 = jax.random.split(key, 7)
    eps = 1e-5
    two_c = 2 * c_feat

    # BatchNorm1d(2C): weight=1, bias=0 (per _init_params); synthetic running stats.
    rm1 = 0.05 * jax.random.normal(k1, (1, two_c), jnp.float32)
    rv1 = 1.0 + 0.1 * jax.random.uniform(k2, (1, two_c), jnp.float32)
    bn1_scale = 1.0 / jnp.sqrt(rv1 + eps)
    bn1_shift = -rm1 * bn1_scale

    # fc1: kaiming_normal_ (fan_in = 2C, gain = sqrt(2)), bias = 0.  Stored (in, out).
    std1 = (2.0 / two_c) ** 0.5
    w1 = std1 * jax.random.normal(k3, (two_c, c_feat), jnp.float32)
    b1 = jnp.zeros((1, c_feat), jnp.float32)

    # BatchNorm1d(C): weight=1, bias=0; synthetic running stats.
    rm2 = 0.05 * jax.random.normal(k4, (1, c_feat), jnp.float32)
    rv2 = 1.0 + 0.1 * jax.random.uniform(k5, (1, c_feat), jnp.float32)
    bn2_scale = 1.0 / jnp.sqrt(rv2 + eps)
    bn2_shift = -rm2 * bn2_scale

    # final = nn.Linear(C, num_classes): default PyTorch init U(-1/sqrt(C), 1/sqrt(C)).
    bound = 1.0 / (c_feat ** 0.5)
    wf = jax.random.uniform(k6, (c_feat, num_classes), jnp.float32, -bound, bound)
    bf = jax.random.uniform(k7, (1, num_classes), jnp.float32, -bound, bound)

    return dict(bn1_scale=bn1_scale, bn1_shift=bn1_shift,
                w1=w1, b1=b1,
                bn2_scale=bn2_scale, bn2_shift=bn2_shift,
                wf=wf, bf=bf)


def reference_head(x_feat, p):
    """Plain-JAX reference of the PyTorch head (un-folded BN, original NCHW order)."""
    n, c, h, w = x_feat.shape
    x = x_feat.reshape(n, c, h * w)
    feat = jnp.concatenate([jnp.max(x, -1), jnp.mean(x, -1)], axis=1)   # max first, avg second
    feat = feat * p["bn1_scale"] + p["bn1_shift"]
    hdd = jnp.maximum(feat @ p["w1"] + p["b1"], 0.0)
    hdd = hdd * p["bn2_scale"] + p["bn2_shift"]
    return hdd @ p["wf"] + p["bf"]


if __name__ == "__main__":
    key = jax.random.PRNGKey(0)
    kx, kp = jax.random.split(key)

    # Small synthetic shapes: batch=2, backbone feature map (C=32, 8x8), num_classes=16.
    # (In the real model C=512, HW=7x7=49, num_classes=1108.)
    N, C, H, W = 2, 32, 8, 8
    NUM_CLASSES = 16

    x_feat = jax.random.normal(kx, (N, C, H, W), jnp.float32)
    params = init_params(kp, C, NUM_CLASSES)
    prepped = prep_head_params(params, NUM_CLASSES)

    logits = recursion_head(x_feat, prepped)
    logits = jax.block_until_ready(logits)

    # Reference uses the same bf16-quantized feature map the kernel consumes; all other
    # math stays f32 so the check remains tight.
    x_bf = x_feat.astype(jnp.bfloat16).astype(jnp.float32)
    ref = reference_head(x_bf, params)

    assert logits.shape == (N, NUM_CLASSES)
    assert jnp.allclose(logits, ref, atol=2e-3, rtol=2e-3), \
        float(jnp.max(jnp.abs(logits - ref)))

    print("KERNEL_OK")
</pallas_src>

<mosaic_0001>
module attributes {stable_mosaic.version = 11 : i64} {
  func.func @recursion_head_kernel(%arg0: i32, %arg1: memref<8x64x32xbf16, #tpu.memory_space<vmem>>, %arg2: memref<32x32xf32, #tpu.memory_space<vmem>>, %arg3: memref<32x32xf32, #tpu.memory_space<vmem>>, %arg4: memref<1x32xf32, #tpu.memory_space<vmem>>, %arg5: memref<32x128xf32, #tpu.memory_space<vmem>>, %arg6: memref<1x128xf32, #tpu.memory_space<vmem>>, %arg7: memref<8x128xf32, #tpu.memory_space<vmem>>) attributes {dimension_semantics = [#tpu.dimension_semantics<parallel>], iteration_bounds = array<i64: 1>, scalar_prefetch = 0 : i64, scratch_operands = 0 : i64, tpu.core_type = #tpu.core_type<tc>, window_params = [{transform_indices = @transform_0, window_bounds = array<i64: 8, 64, 32>}, {pipeline_mode = #tpu.pipeline_mode<synchronous>, transform_indices = @transform_1, window_bounds = array<i64: 32, 32>}, {pipeline_mode = #tpu.pipeline_mode<synchronous>, transform_indices = @transform_2, window_bounds = array<i64: 32, 32>}, {pipeline_mode = #tpu.pipeline_mode<synchronous>, transform_indices = @transform_3, window_bounds = array<i64: 1, 32>}, {pipeline_mode = #tpu.pipeline_mode<synchronous>, transform_indices = @transform_4, window_bounds = array<i64: 32, 128>}, {pipeline_mode = #tpu.pipeline_mode<synchronous>, transform_indices = @transform_5, window_bounds = array<i64: 1, 128>}, {transform_indices = @transform_6, window_bounds = array<i64: 8, 128>}]} {
    %cst = arith.constant 0xFF800000 : f32
    %0 = vector.broadcast %cst : f32 to vector<8x32xf32>
    %cst_0 = arith.constant 0.000000e+00 : f32
    %1 = vector.broadcast %cst_0 : f32 to vector<8x32xf32>
    %c0 = arith.constant 0 : index
    %c0_1 = arith.constant 0 : index
    %c0_2 = arith.constant 0 : index
    %2 = vector.load %arg1[%c0, %c0_1, %c0_2] : memref<8x64x32xbf16, #tpu.memory_space<vmem>>, vector<8x16x32xbf16>
    %3 = arith.extf %2 : vector<8x16x32xbf16> to vector<8x16x32xf32>
    %cst_3 = arith.constant dense<0xFF800000> : vector<8x32xf32>
    %4 = vector.multi_reduction <maximumf>, %3, %cst_3 [1] : vector<8x16x32xf32> to vector<8x32xf32>
    %5 = arith.maximumf %0, %4 : vector<8x32xf32>
    %cst_4 = arith.constant dense<0.000000e+00> : vector<8x32xf32>
    %6 = vector.multi_reduction <add>, %3, %cst_4 [1] : vector<8x16x32xf32> to vector<8x32xf32>
    %7 = arith.addf %1, %6 : vector<8x32xf32>
    %c0_5 = arith.constant 0 : index
    %c16 = arith.constant 16 : index
    %c0_6 = arith.constant 0 : index
    %8 = vector.load %arg1[%c0_5, %c16, %c0_6] : memref<8x64x32xbf16, #tpu.memory_space<vmem>>, vector<8x16x32xbf16>
    %9 = arith.extf %8 : vector<8x16x32xbf16> to vector<8x16x32xf32>
    %cst_7 = arith.constant dense<0xFF800000> : vector<8x32xf32>
    %10 = vector.multi_reduction <maximumf>, %9, %cst_7 [1] : vector<8x16x32xf32> to vector<8x32xf32>
    %11 = arith.maximumf %5, %10 : vector<8x32xf32>
    %cst_8 = arith.constant dense<0.000000e+00> : vector<8x32xf32>
    %12 = vector.multi_reduction <add>, %9, %cst_8 [1] : vector<8x16x32xf32> to vector<8x32xf32>
    %13 = arith.addf %7, %12 : vector<8x32xf32>
    %c0_9 = arith.constant 0 : index
    %c32 = arith.constant 32 : index
    %c0_10 = arith.constant 0 : index
    %14 = vector.load %arg1[%c0_9, %c32, %c0_10] : memref<8x64x32xbf16, #tpu.memory_space<vmem>>, vector<8x16x32xbf16>
    %15 = arith.extf %14 : vector<8x16x32xbf16> to vector<8x16x32xf32>
    %cst_11 = arith.constant dense<0xFF800000> : vector<8x32xf32>
    %16 = vector.multi_reduction <maximumf>, %15, %cst_11 [1] : vector<8x16x32xf32> to vector<8x32xf32>
    %17 = arith.maximumf %11, %16 : vector<8x32xf32>
    %cst_12 = arith.constant dense<0.000000e+00> : vector<8x32xf32>
    %18 = vector.multi_reduction <add>, %15, %cst_12 [1] : vector<8x16x32xf32> to vector<8x32xf32>
    %19 = arith.addf %13, %18 : vector<8x32xf32>
    %c0_13 = arith.constant 0 : index
    %c48 = arith.constant 48 : index
    %c0_14 = arith.constant 0 : index
    %20 = vector.load %arg1[%c0_13, %c48, %c0_14] : memref<8x64x32xbf16, #tpu.memory_space<vmem>>, vector<8x16x32xbf16>
    %21 = arith.extf %20 : vector<8x16x32xbf16> to vector<8x16x32xf32>
    %cst_15 = arith.constant dense<0xFF800000> : vector<8x32xf32>
    %22 = vector.multi_reduction <maximumf>, %21, %cst_15 [1] : vector<8x16x32xf32> to vector<8x32xf32>
    %23 = arith.maximumf %17, %22 : vector<8x32xf32>
    %cst_16 = arith.constant dense<0.000000e+00> : vector<8x32xf32>
    %24 = vector.multi_reduction <add>, %21, %cst_16 [1] : vector<8x16x32xf32> to vector<8x32xf32>
    %25 = arith.addf %19, %24 : vector<8x32xf32>
    %cst_17 = arith.constant 1.562500e-02 : f32
    %26 = vector.broadcast %cst_17 : f32 to vector<8x32xf32>
    %27 = arith.mulf %25, %26 : vector<8x32xf32>
    %c0_18 = arith.constant 0 : index
    %c0_19 = arith.constant 0 : index
    %28 = vector.load %arg2[%c0_18, %c0_19] : memref<32x32xf32, #tpu.memory_space<vmem>>, vector<32x32xf32>
    %cst_20 = arith.constant dense<0.000000e+00> : vector<8x32xf32>
    %29 = tpu.matmul %23, %28, %cst_20 {dimension_numbers = #tpu.dot_dimension_numbers<[1], [0], [0], [1], [0, 0, 1, 1], [], []>} : vector<8x32xf32>, vector<32x32xf32>, vector<8x32xf32> -> vector<8x32xf32>
    %c0_21 = arith.constant 0 : index
    %c0_22 = arith.constant 0 : index
    %30 = vector.load %arg3[%c0_21, %c0_22] : memref<32x32xf32, #tpu.memory_space<vmem>>, vector<32x32xf32>
    %cst_23 = arith.constant dense<0.000000e+00> : vector<8x32xf32>
    %31 = tpu.matmul %27, %30, %cst_23 {dimension_numbers = #tpu.dot_dimension_numbers<[1], [0], [0], [1], [0, 0, 1, 1], [], []>} : vector<8x32xf32>, vector<32x32xf32>, vector<8x32xf32> -> vector<8x32xf32>
    %32 = arith.addf %29, %31 : vector<8x32xf32>
    %c0_24 = arith.constant 0 : index
    %c0_25 = arith.constant 0 : index
    %33 = vector.load %arg4[%c0_24, %c0_25] : memref<1x32xf32, #tpu.memory_space<vmem>>, vector<1x32xf32>
    %34 = vector.broadcast %33 : vector<1x32xf32> to vector<8x32xf32>
    %35 = arith.addf %32, %34 : vector<8x32xf32>
    %cst_26 = arith.constant 0.000000e+00 : f32
    %36 = vector.broadcast %cst_26 : f32 to vector<8x32xf32>
    %37 = arith.maximumf %35, %36 : vector<8x32xf32>
    %c0_27 = arith.constant 0 : index
    %c0_28 = arith.constant 0 : index
    %38 = vector.load %arg5[%c0_27, %c0_28] : memref<32x128xf32, #tpu.memory_space<vmem>>, vector<32x128xf32>
    %cst_29 = arith.constant dense<0.000000e+00> : vector<8x128xf32>
    %39 = tpu.matmul %37, %38, %cst_29 {dimension_numbers = #tpu.dot_dimension_numbers<[1], [0], [0], [1], [0, 0, 1, 1], [], []>} : vector<8x32xf32>, vector<32x128xf32>, vector<8x128xf32> -> vector<8x128xf32>
    %c0_30 = arith.constant 0 : index
    %c0_31 = arith.constant 0 : index
    %40 = vector.load %arg6[%c0_30, %c0_31] : memref<1x128xf32, #tpu.memory_space<vmem>>, vector<1x128xf32>
    %41 = vector.broadcast %40 : vector<1x128xf32> to vector<8x128xf32>
    %42 = arith.addf %39, %41 : vector<8x128xf32>
    %c0_32 = arith.constant 0 : index
    %c0_33 = arith.constant 0 : index
    %43 = vector.load %arg7[%c0_32, %c0_33] : memref<8x128xf32, #tpu.memory_space<vmem>>, vector<8x128xf32>
    tpu.vector_store %arg7[%c0_32, %c0_33], %42 {strides = array<i32>} : memref<8x128xf32, #tpu.memory_space<vmem>>, vector<8x128xf32>,
    return
  }
  func.func @transform_0(%arg0: i32) -> (i32, i32, i32) {
    %c0_i32 = arith.constant 0 : i32
    %c0_i32_0 = arith.constant 0 : i32
    %c0_i32_1 = arith.constant 0 : i32
    return %arg0, %c0_i32, %c0_i32_0 : i32, i32, i32
  }
  func.func @transform_1(%arg0: i32) -> (i32, i32) {
    %c0_i32 = arith.constant 0 : i32
    %c0_i32_0 = arith.constant 0 : i32
    %c0_i32_1 = arith.constant 0 : i32
    return %c0_i32, %c0_i32_0 : i32, i32
  }
  func.func @transform_2(%arg0: i32) -> (i32, i32) {
    %c0_i32 = arith.constant 0 : i32
    %c0_i32_0 = arith.constant 0 : i32
    %c0_i32_1 = arith.constant 0 : i32
    return %c0_i32, %c0_i32_0 : i32, i32
  }
  func.func @transform_3(%arg0: i32) -> (i32, i32) {
    %c0_i32 = arith.constant 0 : i32
    %c0_i32_0 = arith.constant 0 : i32
    %c0_i32_1 = arith.constant 0 : i32
    return %c0_i32, %c0_i32_0 : i32, i32
  }
  func.func @transform_4(%arg0: i32) -> (i32, i32) {
    %c0_i32 = arith.constant 0 : i32
    %c0_i32_0 = arith.constant 0 : i32
    %c0_i32_1 = arith.constant 0 : i32
    return %c0_i32, %c0_i32_0 : i32, i32
  }
  func.func @transform_5(%arg0: i32) -> (i32, i32) {
    %c0_i32 = arith.constant 0 : i32
    %c0_i32_0 = arith.constant 0 : i32
    %c0_i32_1 = arith.constant 0 : i32
    return %c0_i32, %c0_i32_0 : i32, i32
  }
  func.func @transform_6(%arg0: i32) -> (i32, i32) {
    %c0_i32 = arith.constant 0 : i32
    %c0_i32_0 = arith.constant 0 : i32
    return %arg0, %c0_i32 : i32, i32
  }
}

module attributes {stable_mosaic.version = 11 : i64} {
  func.func @recursion_head_kernel(%arg0: i32, %arg1: memref<8x64x32xbf16, #tpu.memory_space<vmem>>, %arg2: memref<32x32xf32, #tpu.memory_space<vmem>>, %arg3: memref<32x32xf32, #tpu.memory_space<vmem>>, %arg4: memref<1x32xf32, #tpu.memory_space<vmem>>, %arg5: memref<32x128xf32, #tpu.memory_space<vmem>>, %arg6: memref<1x128xf32, #tpu.memory_space<vmem>>, %arg7: memref<8x128xf32, #tpu.memory_space<vmem>>) attributes {dimension_semantics = [#tpu.dimension_semantics<parallel>], iteration_bounds = array<i64: 1>, scalar_prefetch = 0 : i64, scratch_operands = 0 : i64, tpu.core_type = #tpu.core_type<tc>, window_params = [{transform_indices = @transform_0, window_bounds = array<i64: 8, 64, 32>}, {pipeline_mode = #tpu.pipeline_mode<synchronous>, transform_indices = @transform_1, window_bounds = array<i64: 32, 32>}, {pipeline_mode = #tpu.pipeline_mode<synchronous>, transform_indices = @transform_2, window_bounds = array<i64: 32, 32>}, {pipeline_mode = #tpu.pipeline_mode<synchronous>, transform_indices = @transform_3, window_bounds = array<i64: 1, 32>}, {pipeline_mode = #tpu.pipeline_mode<synchronous>, transform_indices = @transform_4, window_bounds = array<i64: 32, 128>}, {pipeline_mode = #tpu.pipeline_mode<synchronous>, transform_indices = @transform_5, window_bounds = array<i64: 1, 128>}, {transform_indices = @transform_6, window_bounds = array<i64: 8, 128>}]} {
    %cst = arith.constant 0xFF800000 : f32
    %0 = vector.broadcast %cst : f32 to vector<8x32xf32>
    %cst_0 = arith.constant 0.000000e+00 : f32
    %1 = vector.broadcast %cst_0 : f32 to vector<8x32xf32>
    %c0 = arith.constant 0 : index
    %c0_1 = arith.constant 0 : index
    %c0_2 = arith.constant 0 : index
    %2 = vector.load %arg1[%c0, %c0_1, %c0_2] : memref<8x64x32xbf16, #tpu.memory_space<vmem>>, vector<8x16x32xbf16>
    %3 = arith.extf %2 : vector<8x16x32xbf16> to vector<8x16x32xf32>
    %cst_3 = arith.constant dense<0xFF800000> : vector<8x32xf32>
    %4 = vector.multi_reduction <maximumf>, %3, %cst_3 [1] : vector<8x16x32xf32> to vector<8x32xf32>
    %5 = arith.maximumf %0, %4 : vector<8x32xf32>
    %cst_4 = arith.constant dense<0.000000e+00> : vector<8x32xf32>
    %6 = vector.multi_reduction <add>, %3, %cst_4 [1] : vector<8x16x32xf32> to vector<8x32xf32>
    %7 = arith.addf %1, %6 : vector<8x32xf32>
    %c0_5 = arith.constant 0 : index
    %c16 = arith.constant 16 : index
    %c0_6 = arith.constant 0 : index
    %8 = vector.load %arg1[%c0_5, %c16, %c0_6] : memref<8x64x32xbf16, #tpu.memory_space<vmem>>, vector<8x16x32xbf16>
    %9 = arith.extf %8 : vector<8x16x32xbf16> to vector<8x16x32xf32>
    %cst_7 = arith.constant dense<0xFF800000> : vector<8x32xf32>
    %10 = vector.multi_reduction <maximumf>, %9, %cst_7 [1] : vector<8x16x32xf32> to vector<8x32xf32>
    %11 = arith.maximumf %5, %10 : vector<8x32xf32>
    %cst_8 = arith.constant dense<0.000000e+00> : vector<8x32xf32>
    %12 = vector.multi_reduction <add>, %9, %cst_8 [1] : vector<8x16x32xf32> to vector<8x32xf32>
    %13 = arith.addf %7, %12 : vector<8x32xf32>
    %c0_9 = arith.constant 0 : index
    %c32 = arith.constant 32 : index
    %c0_10 = arith.constant 0 : index
    %14 = vector.load %arg1[%c0_9, %c32, %c0_10] : memref<8x64x32xbf16, #tpu.memory_space<vmem>>, vector<8x16x32xbf16>
    %15 = arith.extf %14 : vector<8x16x32xbf16> to vector<8x16x32xf32>
    %cst_11 = arith.constant dense<0xFF800000> : vector<8x32xf32>
    %16 = vector.multi_reduction <maximumf>, %15, %cst_11 [1] : vector<8x16x32xf32> to vector<8x32xf32>
    %17 = arith.maximumf %11, %16 : vector<8x32xf32>
    %cst_12 = arith.constant dense<0.000000e+00> : vector<8x32xf32>
    %18 = vector.multi_reduction <add>, %15, %cst_12 [1] : vector<8x16x32xf32> to vector<8x32xf32>
    %19 = arith.addf %13, %18 : vector<8x32xf32>
    %c0_13 = arith.constant 0 : index
    %c48 = arith.constant 48 : index
    %c0_14 = arith.constant 0 : index
    %20 = vector.load %arg1[%c0_13, %c48, %c0_14] : memref<8x64x32xbf16, #tpu.memory_space<vmem>>, vector<8x16x32xbf16>
    %21 = arith.extf %20 : vector<8x16x32xbf16> to vector<8x16x32xf32>
    %cst_15 = arith.constant dense<0xFF800000> : vector<8x32xf32>
    %22 = vector.multi_reduction <maximumf>, %21, %cst_15 [1] : vector<8x16x32xf32> to vector<8x32xf32>
    %23 = arith.maximumf %17, %22 : vector<8x32xf32>
    %cst_16 = arith.constant dense<0.000000e+00> : vector<8x32xf32>
    %24 = vector.multi_reduction <add>, %21, %cst_16 [1] : vector<8x16x32xf32> to vector<8x32xf32>
    %25 = arith.addf %19, %24 : vector<8x32xf32>
    %cst_17 = arith.constant 1.562500e-02 : f32
    %26 = vector.broadcast %cst_17 : f32 to vector<8x32xf32>
    %27 = arith.mulf %25, %26 : vector<8x32xf32>
    %c0_18 = arith.constant 0 : index
    %c0_19 = arith.constant 0 : index
    %28 = vector.load %arg2[%c0_18, %c0_19] : memref<32x32xf32, #tpu.memory_space<vmem>>, vector<32x32xf32>
    %cst_20 = arith.constant dense<0.000000e+00> : vector<8x32xf32>
    %29 = tpu.matmul %23, %28, %cst_20 {dimension_numbers = #tpu.dot_dimension_numbers<[1], [0], [0], [1], [0, 0, 1, 1], [], []>} : vector<8x32xf32>, vector<32x32xf32>, vector<8x32xf32> -> vector<8x32xf32>
    %c0_21 = arith.constant 0 : index
    %c0_22 = arith.constant 0 : index
    %30 = vector.load %arg3[%c0_21, %c0_22] : memref<32x32xf32, #tpu.memory_space<vmem>>, vector<32x32xf32>
    %cst_23 = arith.constant dense<0.000000e+00> : vector<8x32xf32>
    %31 = tpu.matmul %27, %30, %cst_23 {dimension_numbers = #tpu.dot_dimension_numbers<[1], [0], [0], [1], [0, 0, 1, 1], [], []>} : vector<8x32xf32>, vector<32x32xf32>, vector<8x32xf32> -> vector<8x32xf32>
    %32 = arith.addf %29, %31 : vector<8x32xf32>
    %c0_24 = arith.constant 0 : index
    %c0_25 = arith.constant 0 : index
    %33 = vector.load %arg4[%c0_24, %c0_25] : memref<1x32xf32, #tpu.memory_space<vmem>>, vector<1x32xf32>
    %34 = vector.broadcast %33 : vector<1x32xf32> to vector<8x32xf32>
    %35 = arith.addf %32, %34 : vector<8x32xf32>
    %cst_26 = arith.constant 0.000000e+00 : f32
    %36 = vector.broadcast %cst_26 : f32 to vector<8x32xf32>
    %37 = arith.maximumf %35, %36 : vector<8x32xf32>
    %c0_27 = arith.constant 0 : index
    %c0_28 = arith.constant 0 : index
    %38 = vector.load %arg5[%c0_27, %c0_28] : memref<32x128xf32, #tpu.memory_space<vmem>>, vector<32x128xf32>
    %cst_29 = arith.constant dense<0.000000e+00> : vector<8x128xf32>
    %39 = tpu.matmul %37, %38, %cst_29 {dimension_numbers = #tpu.dot_dimension_numbers<[1], [0], [0], [1], [0, 0, 1, 1], [], []>} : vector<8x32xf32>, vector<32x128xf32>, vector<8x128xf32> -> vector<8x128xf32>
    %c0_30 = arith.constant 0 : index
    %c0_31 = arith.constant 0 : index
    %40 = vector.load %arg6[%c0_30, %c0_31] : memref<1x128xf32, #tpu.memory_space<vmem>>, vector<1x128xf32>
    %41 = vector.broadcast %40 : vector<1x128xf32> to vector<8x128xf32>
    %42 = arith.addf %39, %41 : vector<8x128xf32>
    %c0_32 = arith.constant 0 : index
    %c0_33 = arith.constant 0 : index
    %43 = vector.load %arg7[%c0_32, %c0_33] : memref<8x128xf32, #tpu.memory_space<vmem>>, vector<8x128xf32>
    tpu.vector_store %arg7[%c0_32, %c0_33], %42 {strides = array<i32>} : memref<8x128xf32, #tpu.memory_space<vmem>>, vector<8x128xf32>,
    return
  }
  func.func @transform_0(%arg0: i32) -> (i32, i32, i32) {
    %c0_i32 = arith.constant 0 : i32
    %c0_i32_0 = arith.constant 0 : i32
    %c0_i32_1 = arith.constant 0 : i32
    return %arg0, %c0_i32, %c0_i32_0 : i32, i32, i32
  }
  func.func @transform_1(%arg0: i32) -> (i32, i32) {
    %c0_i32 = arith.constant 0 : i32
    %c0_i32_0 = arith.constant 0 : i32
    %c0_i32_1 = arith.constant 0 : i32
    return %c0_i32, %c0_i32_0 : i32, i32
  }
  func.func @transform_2(%arg0: i32) -> (i32, i32) {
    %c0_i32 = arith.constant 0 : i32
    %c0_i32_0 = arith.constant 0 : i32
    %c0_i32_1 = arith.constant 0 : i32
    return %c0_i32, %c0_i32_0 : i32, i32
  }
  func.func @transform_3(%arg0: i32) -> (i32, i32) {
    %c0_i32 = arith.constant 0 : i32
    %c0_i32_0 = arith.constant 0 : i32
    %c0_i32_1 = arith.constant 0 : i32
    return %c0_i32, %c0_i32_0 : i32, i32
  }
  func.func @transform_4(%arg0: i32) -> (i32, i32) {
    %c0_i32 = arith.constant 0 : i32
    %c0_i32_0 = arith.constant 0 : i32
    %c0_i32_1 = arith.constant 0 : i32
    return %c0_i32, %c0_i32_0 : i32, i32
  }
  func.func @transform_5(%arg0: i32) -> (i32, i32) {
    %c0_i32 = arith.constant 0 : i32
    %c0_i32_0 = arith.constant 0 : i32
    %c0_i32_1 = arith.constant 0 : i32
    return %c0_i32, %c0_i32_0 : i32, i32
  }
  func.func @transform_6(%arg0: i32) -> (i32, i32) {
    %c0_i32 = arith.constant 0 : i32
    %c0_i32_0 = arith.constant 0 : i32
    return %arg0, %c0_i32 : i32, i32
  }
}

</mosaic_0001>

<llo_original>
// kernel: tpu_custom_call.1
$region0: #{tpu_custom_call.1}
  #allocation0 [shape = 'u32[]', space=smem, size = 0x4, offset = 0x4, fixed_abs, tag = 'smem constant byte address 0x4 - core index']
  #allocation1 [shape = 'u32[72,128]{1,0:T(1,128)}', space=vmem, size = 0x9000, scoped, tag = 'internal scratch']
  %s0 = inlined_call_operand.vmem [shape: bf16[8,64,32], index: 0, kind: input, shape index: {}]
  %s1 = inlined_call_operand.vmem [shape: f32[32,32], index: 1, kind: input, shape index: {}]
  %s2 = inlined_call_operand.vmem [shape: f32[32,32], index: 2, kind: input, shape index: {}]
  %s3 = inlined_call_operand.vmem [shape: f32[1,32], index: 3, kind: input, shape index: {}]
  %s4 = inlined_call_operand.vmem [shape: f32[32,128], index: 4, kind: input, shape index: {}]
  %s5 = inlined_call_operand.vmem [shape: f32[1,128], index: 5, kind: input, shape index: {}]
  %s6 = inlined_call_operand.hbm [shape: f32[8,128], index: 6, kind: output, shape index: {}]
  %s7 = sld [smem:[#allocation0]]
  $region34: #{tpu_custom_call.1} parent=0
    _
  %s9 = ssub.s32 1, %s7
  %s10 = scalar_select 0, %s9, %s7
  $region1: #{tpu_custom_call.1} parent=0
    #allocation2 [shape = 'u8[4096]{0}', space=vmem, size = 0x1000, scoped, tag = 'output window, operand 0, single buffered']
    #allocation3 [shape = 's32[1]{0}', space=sflag, size = 0x4, scoped, tag = 'scoped memory for tpu_custom_call.1']
    %11 = vsyncpa [#allocation3], 0
    // Predicated region
    $region2: #{tpu_custom_call.1} parent=1 // pred_check
      _
    $region3: #{tpu_custom_call.1} parent=1 // pred_check_branch
      %13 = sbr.rel (0) target = $region5
    $region4: #{tpu_custom_call.1} parent=1 // pred_region
      _
    $region5: #{tpu_custom_call.1} parent=1 // pred_fallthru
      _
    // Predicated region
    $region6: #{tpu_custom_call.1} parent=1 // pred_check
      _
    $region7: #{tpu_custom_call.1} parent=1 // pred_check_branch
      %15 = sbr.rel (0) target = $region9
    $region8: #{tpu_custom_call.1} parent=1 // pred_region
      _
    $region9: #{tpu_custom_call.1} parent=1 // pred_fallthru
      _
    // Predicated region
    $region10: #{tpu_custom_call.1} parent=1 // pred_check
      _
    $region11: #{tpu_custom_call.1} parent=1 // pred_check_branch
      %17 = sbr.rel (0) target = $region13
    $region12: #{tpu_custom_call.1} parent=1 // pred_region
      _
    $region13: #{tpu_custom_call.1} parent=1 // pred_fallthru
      _
    // Predicated region
    $region14: #{tpu_custom_call.1} parent=1 // pred_check
      _
    $region15: #{tpu_custom_call.1} parent=1 // pred_check_branch
      %19 = sbr.rel (0) target = $region17
    $region16: #{tpu_custom_call.1} parent=1 // pred_region
      _
    $region17: #{tpu_custom_call.1} parent=1 // pred_fallthru
      _
    // Predicated region
    $region18: #{tpu_custom_call.1} parent=1 // pred_check
      _
    $region19: #{tpu_custom_call.1} parent=1 // pred_check_branch
      %21 = sbr.rel (0) target = $region21
    $region20: #{tpu_custom_call.1} parent=1 // pred_region
      _
    $region21: #{tpu_custom_call.1} parent=1 // pred_fallthru
      _
    // Predicated region
    $region22: #{tpu_custom_call.1} parent=1 // pred_check
      _
    $region23: #{tpu_custom_call.1} parent=1 // pred_check_branch
      %23 = sbr.rel (0) target = $region25
    $region24: #{tpu_custom_call.1} parent=1 // pred_region
      _
    $region25: #{tpu_custom_call.1} parent=1 // pred_fallthru
      _
    %v24 = vld [vmem:[%s0] sm:$0xf]
    %v25 = vld [vmem:[%s0 + $0x4] sm:$0xf]
    %v26 = vld [vmem:[%s0 + $0x20] sm:$0xf]
    %v27 = vld [vmem:[%s0 + $0x24] sm:$0xf]
    %v28 = vld [vmem:[%s0 + $0x40] sm:$0xf]
    %v29 = vld [vmem:[%s0 + $0x44] sm:$0xf]
    %v30 = vld [vmem:[%s0 + $0x60] sm:$0xf]
    %v31 = vld [vmem:[%s0 + $0x64] sm:$0xf]
    %v32 = vld [vmem:[%s0 + $0x80] sm:$0xf]
    %v33 = vld [vmem:[%s0 + $0x84] sm:$0xf]
    %v34 = vld [vmem:[%s0 + $0xa0] sm:$0xf]
    %v35 = vld [vmem:[%s0 + $0xa4] sm:$0xf]
    %v36 = vld [vmem:[%s0 + $0xc0] sm:$0xf]
    %v37 = vld [vmem:[%s0 + $0xc4] sm:$0xf]
    %v38 = vld [vmem:[%s0 + $0xe0] sm:$0xf]
    %v39 = vld [vmem:[%s0 + $0xe4] sm:$0xf]
    %v40 = vunpack.c.l.bf16 %v24
    %v41 = vunpack.c.l.bf16 %v25
    %v42 = vunpack.c.l.bf16 %v26
    %v43 = vunpack.c.l.bf16 %v27
    %v44 = vunpack.c.l.bf16 %v28
    %v45 = vunpack.c.l.bf16 %v29
    %v46 = vunpack.c.l.bf16 %v30
    %v47 = vunpack.c.l.bf16 %v31
    %v48 = vunpack.c.l.bf16 %v32
    %v49 = vunpack.c.l.bf16 %v33
    %v50 = vunpack.c.l.bf16 %v34
    %v51 = vunpack.c.l.bf16 %v35
    %v52 = vunpack.c.l.bf16 %v36
    %v53 = vunpack.c.l.bf16 %v37
    %v54 = vunpack.c.l.bf16 %v38
    %v55 = vunpack.c.l.bf16 %v39
    %vm56 = vcmask 261120
    %v57 = vsel %vm56, %v40, -inf
    %v58 = vsel %vm56, %v41, -inf
    %v59 = vmax.f32 %v57, %v58
    %v60 = vrot.slane %v59, 4
    %v61 = vmax.f32 %v59, %v60
    %v62 = vrot.slane %v61, 2
    %v63 = vmax.f32 %v61, %v62
    %v64 = vrot.slane %v63, 1
    %v65 = vmax.f32 %v63, %v64
    %v66 = vsel %vm56, %v42, -inf
    %v67 = vsel %vm56, %v43, -inf
    %v68 = vmax.f32 %v66, %v67
    %v69 = vrot.slane %v68, 4
    %v70 = vmax.f32 %v68, %v69
    %v71 = vrot.slane %v70, 2
    %v72 = vmax.f32 %v70, %v71
    %v73 = vrot.slane %v72, 1
    %v74 = vmax.f32 %v72, %v73
    %v75 = vsel %vm56, %v44, -inf
    %v76 = vsel %vm56, %v45, -inf
    %v77 = vmax.f32 %v75, %v76
    %v78 = vrot.slane %v77, 4
    %v79 = vmax.f32 %v77, %v78
    %v80 = vrot.slane %v79, 2
    %v81 = vmax.f32 %v79, %v80
    %v82 = vrot.slane %v81, 1
    %v83 = vmax.f32 %v81, %v82
    %v84 = vsel %vm56, %v46, -inf
    %v85 = vsel %vm56, %v47, -inf
    %v86 = vmax.f32 %v84, %v85
    %v87 = vrot.slane %v86, 4
    %v88 = vmax.f32 %v86, %v87
    %v89 = vrot.slane %v88, 2
    %v90 = vmax.f32 %v88, %v89
    %v91 = vrot.slane %v90, 1
    %v92 = vmax.f32 %v90, %v91
    %v93 = vsel %vm56, %v48, -inf
    %v94 = vsel %vm56, %v49, -inf
    %v95 = vmax.f32 %v93, %v94
    %v96 = vrot.slane %v95, 4
    %v97 = vmax.f32 %v95, %v96
    %v98 = vrot.slane %v97, 2
    %v99 = vmax.f32 %v97, %v98
    %v100 = vrot.slane %v99, 1
    %v101 = vmax.f32 %v99, %v100
    %v102 = vsel %vm56, %v50, -inf
    %v103 = vsel %vm56, %v51, -inf
    %v104 = vmax.f32 %v102, %v103
    %v105 = vrot.slane %v104, 4
    %v106 = vmax.f32 %v104, %v105
    %v107 = vrot.slane %v106, 2
    %v108 = vmax.f32 %v106, %v107
    %v109 = vrot.slane %v108, 1
    %v110 = vmax.f32 %v108, %v109
    %v111 = vsel %vm56, %v52, -inf
    %v112 = vsel %vm56, %v53, -inf
    %v113 = vmax.f32 %v111, %v112
    %v114 = vrot.slane %v113, 4
    %v115 = vmax.f32 %v113, %v114
    %v116 = vrot.slane %v115, 2
    %v117 = vmax.f32 %v115, %v116
    %v118 = vrot.slane %v117, 1
    %v119 = vmax.f32 %v117, %v118
    %v120 = vsel %vm56, %v54, -inf
    %v121 = vsel %vm56, %v55, -inf
    %v122 = vmax.f32 %v120, %v121
    %v123 = vrot.slane %v122, 4
    %v124 = vmax.f32 %v122, %v123
    %v125 = vrot.slane %v124, 2
    %v126 = vmax.f32 %v124, %v125
    %v127 = vrot.slane %v126, 1
    %v128 = vmax.f32 %v126, %v127
    %v129 = vsel %vm56, %v40, 0.0
    %v130 = vsel %vm56, %v41, 0.0
    %v131 = vadd.f32 %v129, %v130
    %v132 = vrot.slane %v131, 4
    %v133 = vadd.f32 %v131, %v132
    %v134 = vrot.slane %v133, 2
    %v135 = vadd.f32 %v133, %v134
    %v136 = vrot.slane %v135, 1
    %v137 = vadd.f32 %v135, %v136
    %v138 = vsel %vm56, %v42, 0.0
    %v139 = vsel %vm56, %v43, 0.0
    %v140 = vadd.f32 %v138, %v139
    %v141 = vrot.slane %v140, 4
    %v142 = vadd.f32 %v140, %v141
    %v143 = vrot.slane %v142, 2
    %v144 = vadd.f32 %v142, %v143
    %v145 = vrot.slane %v144, 1
    %v146 = vadd.f32 %v144, %v145
    %v147 = vsel %vm56, %v44, 0.0
    %v148 = vsel %vm56, %v45, 0.0
    %v149 = vadd.f32 %v147, %v148
    %v150 = vrot.slane %v149, 4
    %v151 = vadd.f32 %v149, %v150
    %v152 = vrot.slane %v151, 2
    %v153 = vadd.f32 %v151, %v152
    %v154 = vrot.slane %v153, 1
    %v155 = vadd.f32 %v153, %v154
    %v156 = vsel %vm56, %v46, 0.0
    %v157 = vsel %vm56, %v47, 0.0
    %v158 = vadd.f32 %v156, %v157
    %v159 = vrot.slane %v158, 4
    %v160 = vadd.f32 %v158, %v159
    %v161 = vrot.slane %v160, 2
    %v162 = vadd.f32 %v160, %v161
    %v163 = vrot.slane %v162, 1
    %v164 = vadd.f32 %v162, %v163
    %v165 = vsel %vm56, %v48, 0.0
    %v166 = vsel %vm56, %v49, 0.0
    %v167 = vadd.f32 %v165, %v166
    %v168 = vrot.slane %v167, 4
    %v169 = vadd.f32 %v167, %v168
    %v170 = vrot.slane %v169, 2
    %v171 = vadd.f32 %v169, %v170
    %v172 = vrot.slane %v171, 1
    %v173 = vadd.f32 %v171, %v172
    %v174 = vsel %vm56, %v50, 0.0
    %v175 = vsel %vm56, %v51, 0.0
    %v176 = vadd.f32 %v174, %v175
    %v177 = vrot.slane %v176, 4
    %v178 = vadd.f32 %v176, %v177
    %v179 = vrot.slane %v178, 2
    %v180 = vadd.f32 %v178, %v179
    %v181 = vrot.slane %v180, 1
    %v182 = vadd.f32 %v180, %v181
    %v183 = vsel %vm56, %v52, 0.0
    %v184 = vsel %vm56, %v53, 0.0
    %v185 = vadd.f32 %v183, %v184
    %v186 = vrot.slane %v185, 4
    %v187 = vadd.f32 %v185, %v186
    %v188 = vrot.slane %v187, 2
    %v189 = vadd.f32 %v187, %v188
    %v190 = vrot.slane %v189, 1
    %v191 = vadd.f32 %v189, %v190
    %v192 = vsel %vm56, %v54, 0.0
    %v193 = vsel %vm56, %v55, 0.0
    %v194 = vadd.f32 %v192, %v193
    %v195 = vrot.slane %v194, 4
    %v196 = vadd.f32 %v194, %v195
    %v197 = vrot.slane %v196, 2
    %v198 = vadd.f32 %v196, %v197
    %v199 = vrot.slane %v198, 1
    %v200 = vadd.f32 %v198, %v199
    %v201 = vadd.f32 %v137, 0.0
    %v202 = vadd.f32 %v146, 0.0
    %v203 = vadd.f32 %v155, 0.0
    %v204 = vadd.f32 %v164, 0.0
    %v205 = vadd.f32 %v173, 0.0
    %v206 = vadd.f32 %v182, 0.0
    %v207 = vadd.f32 %v191, 0.0
    %v208 = vadd.f32 %v200, 0.0
    %v209 = vld [vmem:[%s0 + $0x8] sm:$0xf]
    %v210 = vld [vmem:[%s0 + $0xc] sm:$0xf]
    %v211 = vld [vmem:[%s0 + $0x28] sm:$0xf]
    %v212 = vld [vmem:[%s0 + $0x2c] sm:$0xf]
    %v213 = vld [vmem:[%s0 + $0x48] sm:$0xf]
    %v214 = vld [vmem:[%s0 + $0x4c] sm:$0xf]
    %v215 = vld [vmem:[%s0 + $0x68] sm:$0xf]
    %v216 = vld [vmem:[%s0 + $0x6c] sm:$0xf]
    %v217 = vld [vmem:[%s0 + $0x88] sm:$0xf]
    %v218 = vld [vmem:[%s0 + $0x8c] sm:$0xf]
    %v219 = vld [vmem:[%s0 + $0xa8] sm:$0xf]
    %v220 = vld [vmem:[%s0 + $0xac] sm:$0xf]
    %v221 = vld [vmem:[%s0 + $0xc8] sm:$0xf]
    %v222 = vld [vmem:[%s0 + $0xcc] sm:$0xf]
    %v223 = vld [vmem:[%s0 + $0xe8] sm:$0xf]
    %v224 = vld [vmem:[%s0 + $0xec] sm:$0xf]
    %v225 = vunpack.c.l.bf16 %v209
    %v226 = vunpack.c.l.bf16 %v210
    %v227 = vunpack.c.l.bf16 %v211
    %v228 = vunpack.c.l.bf16 %v212
    %v229 = vunpack.c.l.bf16 %v213
    %v230 = vunpack.c.l.bf16 %v214
    %v231 = vunpack.c.l.bf16 %v215
    %v232 = vunpack.c.l.bf16 %v216
    %v233 = vunpack.c.l.bf16 %v217
    %v234 = vunpack.c.l.bf16 %v218
    %v235 = vunpack.c.l.bf16 %v219
    %v236 = vunpack.c.l.bf16 %v220
    %v237 = vunpack.c.l.bf16 %v221
    %v238 = vunpack.c.l.bf16 %v222
    %v239 = vunpack.c.l.bf16 %v223
    %v240 = vunpack.c.l.bf16 %v224
    %v241 = vsel %vm56, %v225, -inf
    %v242 = vsel %vm56, %v226, -inf
    %v243 = vmax.f32 %v241, %v242
    %v244 = vrot.slane %v243, 4
    %v245 = vmax.f32 %v243, %v244
    %v246 = vrot.slane %v245, 2
    %v247 = vmax.f32 %v245, %v246
    %v248 = vrot.slane %v247, 1
    %v249 = vmax.f32 %v247, %v248
    %v250 = vsel %vm56, %v227, -inf
    %v251 = vsel %vm56, %v228, -inf
    %v252 = vmax.f32 %v250, %v251
    %v253 = vrot.slane %v252, 4
    %v254 = vmax.f32 %v252, %v253
    %v255 = vrot.slane %v254, 2
    %v256 = vmax.f32 %v254, %v255
    %v257 = vrot.slane %v256, 1
    %v258 = vmax.f32 %v256, %v257
    %v259 = vsel %vm56, %v229, -inf
    %v260 = vsel %vm56, %v230, -inf
    %v261 = vmax.f32 %v259, %v260
    %v262 = vrot.slane %v261, 4
    %v263 = vmax.f32 %v261, %v262
    %v264 = vrot.slane %v263, 2
    %v265 = vmax.f32 %v263, %v264
    %v266 = vrot.slane %v265, 1
    %v267 = vmax.f32 %v265, %v266
    %v268 = vsel %vm56, %v231, -inf
    %v269 = vsel %vm56, %v232, -inf
    %v270 = vmax.f32 %v268, %v269
    %v271 = vrot.slane %v270, 4
    %v272 = vmax.f32 %v270, %v271
    %v273 = vrot.slane %v272, 2
    %v274 = vmax.f32 %v272, %v273
    %v275 = vrot.slane %v274, 1
    %v276 = vmax.f32 %v274, %v275
    %v277 = vsel %vm56, %v233, -inf
    %v278 = vsel %vm56, %v234, -inf
    %v279 = vmax.f32 %v277, %v278
    %v280 = vrot.slane %v279, 4
    %v281 = vmax.f32 %v279, %v280
    %v282 = vrot.slane %v281, 2
    %v283 = vmax.f32 %v281, %v282
    %v284 = vrot.slane %v283, 1
    %v285 = vmax.f32 %v283, %v284
    %v286 = vsel %vm56, %v235, -inf
    %v287 = vsel %vm56, %v236, -inf
    %v288 = vmax.f32 %v286, %v287
    %v289 = vrot.slane %v288, 4
    %v290 = vmax.f32 %v288, %v289
    %v291 = vrot.slane %v290, 2
    %v292 = vmax.f32 %v290, %v291
    %v293 = vrot.slane %v292, 1
    %v294 = vmax.f32 %v292, %v293
    %v295 = vsel %vm56, %v237, -inf
    %v296 = vsel %vm56, %v238, -inf
    %v297 = vmax.f32 %v295, %v296
    %v298 = vrot.slane %v297, 4
    %v299 = vmax.f32 %v297, %v298
    %v300 = vrot.slane %v299, 2
    %v301 = vmax.f32 %v299, %v300
    %v302 = vrot.slane %v301, 1
    %v303 = vmax.f32 %v301, %v302
    %v304 = vsel %vm56, %v239, -inf
    %v305 = vsel %vm56, %v240, -inf
    %v306 = vmax.f32 %v304, %v305
    %v307 = vrot.slane %v306, 4
    %v308 = vmax.f32 %v306, %v307
    %v309 = vrot.slane %v308, 2
    %v310 = vmax.f32 %v308, %v309
    %v311 = vrot.slane %v310, 1
    %v312 = vmax.f32 %v310, %v311
    %v313 = vmax.f32 %v65, %v249
    %v314 = vmax.f32 %v74, %v258
    %v315 = vmax.f32 %v83, %v267
    %v316 = vmax.f32 %v92, %v276
    %v317 = vmax.f32 %v101, %v285
    %v318 = vmax.f32 %v110, %v294
    %v319 = vmax.f32 %v119, %v303
    %v320 = vmax.f32 %v128, %v312
    %v321 = vsel %vm56, %v225, 0.0
    %v322 = vsel %vm56, %v226, 0.0
    %v323 = vadd.f32 %v321, %v322
    %v324 = vrot.slane %v323, 4
    %v325 = vadd.f32 %v323, %v324
    %v326 = vrot.slane %v325, 2
    %v327 = vadd.f32 %v325, %v326
    %v328 = vrot.slane %v327, 1
    %v329 = vadd.f32 %v327, %v328
    %v330 = vsel %vm56, %v227, 0.0
    %v331 = vsel %vm56, %v228, 0.0
    %v332 = vadd.f32 %v330, %v331
    %v333 = vrot.slane %v332, 4
    %v334 = vadd.f32 %v332, %v333
    %v335 = vrot.slane %v334, 2
    %v336 = vadd.f32 %v334, %v335
    %v337 = vrot.slane %v336, 1
    %v338 = vadd.f32 %v336, %v337
    %v339 = vsel %vm56, %v229, 0.0
    %v340 = vsel %vm56, %v230, 0.0
    %v341 = vadd.f32 %v339, %v340
    %v342 = vrot.slane %v341, 4
    %v343 = vadd.f32 %v341, %v342
    %v344 = vrot.slane %v343, 2
    %v345 = vadd.f32 %v343, %v344
    %v346 = vrot.slane %v345, 1
    %v347 = vadd.f32 %v345, %v346
    %v348 = vsel %vm56, %v231, 0.0
    %v349 = vsel %vm56, %v232, 0.0
    %v350 = vadd.f32 %v348, %v349
    %v351 = vrot.slane %v350, 4
    %v352 = vadd.f32 %v350, %v351
    %v353 = vrot.slane %v352, 2
    %v354 = vadd.f32 %v352, %v353
    %v355 = vrot.slane %v354, 1
    %v356 = vadd.f32 %v354, %v355
    %v357 = vsel %vm56, %v233, 0.0
    %v358 = vsel %vm56, %v234, 0.0
    %v359 = vadd.f32 %v357, %v358
    %v360 = vrot.slane %v359, 4
    %v361 = vadd.f32 %v359, %v360
    %v362 = vrot.slane %v361, 2
    %v363 = vadd.f32 %v361, %v362
    %v364 = vrot.slane %v363, 1
    %v365 = vadd.f32 %v363, %v364
    %v366 = vsel %vm56, %v235, 0.0
    %v367 = vsel %vm56, %v236, 0.0
    %v368 = vadd.f32 %v366, %v367
    %v369 = vrot.slane %v368, 4
    %v370 = vadd.f32 %v368, %v369
    %v371 = vrot.slane %v370, 2
    %v372 = vadd.f32 %v370, %v371
    %v373 = vrot.slane %v372, 1
    %v374 = vadd.f32 %v372, %v373
    %v375 = vsel %vm56, %v237, 0.0
    %v376 = vsel %vm56, %v238, 0.0
    %v377 = vadd.f32 %v375, %v376
    %v378 = vrot.slane %v377, 4
    %v379 = vadd.f32 %v377, %v378
    %v380 = vrot.slane %v379, 2
    %v381 = vadd.f32 %v379, %v380
    %v382 = vrot.slane %v381, 1
    %v383 = vadd.f32 %v381, %v382
    %v384 = vsel %vm56, %v239, 0.0
    %v385 = vsel %vm56, %v240, 0.0
    %v386 = vadd.f32 %v384, %v385
    %v387 = vrot.slane %v386, 4
    %v388 = vadd.f32 %v386, %v387
    %v389 = vrot.slane %v388, 2
    %v390 = vadd.f32 %v388, %v389
    %v391 = vrot.slane %v390, 1
    %v392 = vadd.f32 %v390, %v391
    %v393 = vadd.f32 %v201, %v329
    %v394 = vadd.f32 %v202, %v338
    %v395 = vadd.f32 %v203, %v347
    %v396 = vadd.f32 %v204, %v356
    %v397 = vadd.f32 %v205, %v365
    %v398 = vadd.f32 %v206, %v374
    %v399 = vadd.f32 %v207, %v383
    %v400 = vadd.f32 %v208, %v392
    %v401 = vld [vmem:[%s0 + $0x10] sm:$0xf]
    %v402 = vld [vmem:[%s0 + $0x14] sm:$0xf]
    %v403 = vld [vmem:[%s0 + $0x30] sm:$0xf]
    %v404 = vld [vmem:[%s0 + $0x34] sm:$0xf]
    %v405 = vld [vmem:[%s0 + $0x50] sm:$0xf]
    %v406 = vld [vmem:[%s0 + $0x54] sm:$0xf]
    %v407 = vld [vmem:[%s0 + $0x70] sm:$0xf]
    %v408 = vld [vmem:[%s0 + $0x74] sm:$0xf]
    %v409 = vld [vmem:[%s0 + $0x90] sm:$0xf]
    %v410 = vld [vmem:[%s0 + $0x94] sm:$0xf]
    %v411 = vld [vmem:[%s0 + $0xb0] sm:$0xf]
    %v412 = vld [vmem:[%s0 + $0xb4] sm:$0xf]
    %v413 = vld [vmem:[%s0 + $0xd0] sm:$0xf]
    %v414 = vld [vmem:[%s0 + $0xd4] sm:$0xf]
    %v415 = vld [vmem:[%s0 + $0xf0] sm:$0xf]
    %v416 = vld [vmem:[%s0 + $0xf4] sm:$0xf]
    %v417 = vunpack.c.l.bf16 %v401
    %v418 = vunpack.c.l.bf16 %v402
    %v419 = vunpack.c.l.bf16 %v403
    %v420 = vunpack.c.l.bf16 %v404
    %v421 = vunpack.c.l.bf16 %v405
    %v422 = vunpack.c.l.bf16 %v406
    %v423 = vunpack.c.l.bf16 %v407
    %v424 = vunpack.c.l.bf16 %v408
    %v425 = vunpack.c.l.bf16 %v409
    %v426 = vunpack.c.l.bf16 %v410
    %v427 = vunpack.c.l.bf16 %v411
    %v428 = vunpack.c.l.bf16 %v412
    %v429 = vunpack.c.l.bf16 %v413
    %v430 = vunpack.c.l.bf16 %v414
    %v431 = vunpack.c.l.bf16 %v415
    %v432 = vunpack.c.l.bf16 %v416
    %v433 = vsel %vm56, %v417, -inf
    %v434 = vsel %vm56, %v418, -inf
    %v435 = vmax.f32 %v433, %v434
    %v436 = vrot.slane %v435, 4
    %v437 = vmax.f32 %v435, %v436
    %v438 = vrot.slane %v437, 2
    %v439 = vmax.f32 %v437, %v438
    %v440 = vrot.slane %v439, 1
    %v441 = vmax.f32 %v439, %v440
    %v442 = vsel %vm56, %v419, -inf
    %v443 = vsel %vm56, %v420, -inf
    %v444 = vmax.f32 %v442, %v443
    %v445 = vrot.slane %v444, 4
    %v446 = vmax.f32 %v444, %v445
    %v447 = vrot.slane %v446, 2
    %v448 = vmax.f32 %v446, %v447
    %v449 = vrot.slane %v448, 1
    %v450 = vmax.f32 %v448, %v449
    %v451 = vsel %vm56, %v421, -inf
    %v452 = vsel %vm56, %v422, -inf
    %v453 = vmax.f32 %v451, %v452
    %v454 = vrot.slane %v453, 4
    %v455 = vmax.f32 %v453, %v454
    %v456 = vrot.slane %v455, 2
    %v457 = vmax.f32 %v455, %v456
    %v458 = vrot.slane %v457, 1
    %v459 = vmax.f32 %v457, %v458
    %v460 = vsel %vm56, %v423, -inf
    %v461 = vsel %vm56, %v424, -inf
    %v462 = vmax.f32 %v460, %v461
    %v463 = vrot.slane %v462, 4
    %v464 = vmax.f32 %v462, %v463
    %v465 = vrot.slane %v464, 2
    %v466 = vmax.f32 %v464, %v465
    %v467 = vrot.slane %v466, 1
    %v468 = vmax.f32 %v466, %v467
    %v469 = vsel %vm56, %v425, -inf
    %v470 = vsel %vm56, %v426, -inf
    %v471 = vmax.f32 %v469, %v470
    %v472 = vrot.slane %v471, 4
    %v473 = vmax.f32 %v471, %v472
    %v474 = vrot.slane %v473, 2
    %v475 = vmax.f32 %v473, %v474
    %v476 = vrot.slane %v475, 1
    %v477 = vmax.f32 %v475, %v476
    %v478 = vsel %vm56, %v427, -inf
    %v479 = vsel %vm56, %v428, -inf
    %v480 = vmax.f32 %v478, %v479
    %v481 = vrot.slane %v480, 4
    %v482 = vmax.f32 %v480, %v481
    %v483 = vrot.slane %v482, 2
    %v484 = vmax.f32 %v482, %v483
    %v485 = vrot.slane %v484, 1
    %v486 = vmax.f32 %v484, %v485
    %v487 = vsel %vm56, %v429, -inf
    %v488 = vsel %vm56, %v430, -inf
    %v489 = vmax.f32 %v487, %v488
    %v490 = vrot.slane %v489, 4
    %v491 = vmax.f32 %v489, %v490
    %v492 = vrot.slane %v491, 2
    %v493 = vmax.f32 %v491, %v492
    %v494 = vrot.slane %v493, 1
    %v495 = vmax.f32 %v493, %v494
    %v496 = vsel %vm56, %v431, -inf
    %v497 = vsel %vm56, %v432, -inf
    %v498 = vmax.f32 %v496, %v497
    %v499 = vrot.slane %v498, 4
    %v500 = vmax.f32 %v498, %v499
    %v501 = vrot.slane %v500, 2
    %v502 = vmax.f32 %v500, %v501
    %v503 = vrot.slane %v502, 1
    %v504 = vmax.f32 %v502, %v503
    %v505 = vmax.f32 %v313, %v441
    %v506 = vmax.f32 %v314, %v450
    %v507 = vmax.f32 %v315, %v459
    %v508 = vmax.f32 %v316, %v468
    %v509 = vmax.f32 %v317, %v477
    %v510 = vmax.f32 %v318, %v486
    %v511 = vmax.f32 %v319, %v495
    %v512 = vmax.f32 %v320, %v504
    %v513 = vsel %vm56, %v417, 0.0
    %v514 = vsel %vm56, %v418, 0.0
    %v515 = vadd.f32 %v513, %v514
    %v516 = vrot.slane %v515, 4
    %v517 = vadd.f32 %v515, %v516
    %v518 = vrot.slane %v517, 2
    %v519 = vadd.f32 %v517, %v518
    %v520 = vrot.slane %v519, 1
    %v521 = vadd.f32 %v519, %v520
    %v522 = vsel %vm56, %v419, 0.0
    %v523 = vsel %vm56, %v420, 0.0
    %v524 = vadd.f32 %v522, %v523
    %v525 = vrot.slane %v524, 4
    %v526 = vadd.f32 %v524, %v525
    %v527 = vrot.slane %v526, 2
    %v528 = vadd.f32 %v526, %v527
    %v529 = vrot.slane %v528, 1
    %v530 = vadd.f32 %v528, %v529
    %v531 = vsel %vm56, %v421, 0.0
    %v532 = vsel %vm56, %v422, 0.0
    %v533 = vadd.f32 %v531, %v532
    %v534 = vrot.slane %v533, 4
    %v535 = vadd.f32 %v533, %v534
    %v536 = vrot.slane %v535, 2
    %v537 = vadd.f32 %v535, %v536
    %v538 = vrot.slane %v537, 1
    %v539 = vadd.f32 %v537, %v538
    %v540 = vsel %vm56, %v423, 0.0
    %v541 = vsel %vm56, %v424, 0.0
    %v542 = vadd.f32 %v540, %v541
    %v543 = vrot.slane %v542, 4
    %v544 = vadd.f32 %v542, %v543
    %v545 = vrot.slane %v544, 2
    %v546 = vadd.f32 %v544, %v545
    %v547 = vrot.slane %v546, 1
    %v548 = vadd.f32 %v546, %v547
    %v549 = vsel %vm56, %v425, 0.0
    %v550 = vsel %vm56, %v426, 0.0
    %v551 = vadd.f32 %v549, %v550
    %v552 = vrot.slane %v551, 4
    %v553 = vadd.f32 %v551, %v552
    %v554 = vrot.slane %v553, 2
    %v555 = vadd.f32 %v553, %v554
    %v556 = vrot.slane %v555, 1
    %v557 = vadd.f32 %v555, %v556
    %v558 = vsel %vm56, %v427, 0.0
    %v559 = vsel %vm56, %v428, 0.0
    %v560 = vadd.f32 %v558, %v559
    %v561 = vrot.slane %v560, 4
    %v562 = vadd.f32 %v560, %v561
    %v563 = vrot.slane %v562, 2
    %v564 = vadd.f32 %v562, %v563
    %v565 = vrot.slane %v564, 1
    %v566 = vadd.f32 %v564, %v565
    %v567 = vsel %vm56, %v429, 0.0
    %v568 = vsel %vm56, %v430, 0.0
    %v569 = vadd.f32 %v567, %v568
    %v570 = vrot.slane %v569, 4
    %v571 = vadd.f32 %v569, %v570
    %v572 = vrot.slane %v571, 2
    %v573 = vadd.f32 %v571, %v572
    %v574 = vrot.slane %v573, 1
    %v575 = vadd.f32 %v573, %v574
    %v576 = vsel %vm56, %v431, 0.0
    %v577 = vsel %vm56, %v432, 0.0
    %v578 = vadd.f32 %v576, %v577
    %v579 = vrot.slane %v578, 4
    %v580 = vadd.f32 %v578, %v579
    %v581 = vrot.slane %v580, 2
    %v582 = vadd.f32 %v580, %v581
    %v583 = vrot.slane %v582, 1
    %v584 = vadd.f32 %v582, %v583
    %v585 = vadd.f32 %v393, %v521
    %v586 = vadd.f32 %v394, %v530
    %v587 = vadd.f32 %v395, %v539
    %v588 = vadd.f32 %v396, %v548
    %v589 = vadd.f32 %v397, %v557
    %v590 = vadd.f32 %v398, %v566
    %v591 = vadd.f32 %v399, %v575
    %v592 = vadd.f32 %v400, %v584
    %v593 = vld [vmem:[%s0 + $0x18] sm:$0xf]
    %v594 = vld [vmem:[%s0 + $0x1c] sm:$0xf]
    %v595 = vld [vmem:[%s0 + $0x38] sm:$0xf]
    %v596 = vld [vmem:[%s0 + $0x3c] sm:$0xf]
    %v597 = vld [vmem:[%s0 + $0x58] sm:$0xf]
    %v598 = vld [vmem:[%s0 + $0x5c] sm:$0xf]
    %v599 = vld [vmem:[%s0 + $0x78] sm:$0xf]
    %v600 = vld [vmem:[%s0 + $0x7c] sm:$0xf]
    %v601 = vld [vmem:[%s0 + $0x98] sm:$0xf]
    %v602 = vld [vmem:[%s0 + $0x9c] sm:$0xf]
    %v603 = vld [vmem:[%s0 + $0xb8] sm:$0xf]
    %v604 = vld [vmem:[%s0 + $0xbc] sm:$0xf]
    %v605 = vld [vmem:[%s0 + $0xd8] sm:$0xf]
    %v606 = vld [vmem:[%s0 + $0xdc] sm:$0xf]
    %v607 = vld [vmem:[%s0 + $0xf8] sm:$0xf]
    %v608 = vld [vmem:[%s0 + $0xfc] sm:$0xf]
    %v609 = vunpack.c.l.bf16 %v593
    %v610 = vunpack.c.l.bf16 %v594
    %v611 = vunpack.c.l.bf16 %v595
    %v612 = vunpack.c.l.bf16 %v596
    %v613 = vunpack.c.l.bf16 %v597
    %v614 = vunpack.c.l.bf16 %v598
    %v615 = vunpack.c.l.bf16 %v599
    %v616 = vunpack.c.l.bf16 %v600
    %v617 = vunpack.c.l.bf16 %v601
    %v618 = vunpack.c.l.bf16 %v602
    %v619 = vunpack.c.l.bf16 %v603
    %v620 = vunpack.c.l.bf16 %v604
    %v621 = vunpack.c.l.bf16 %v605
    %v622 = vunpack.c.l.bf16 %v606
    %v623 = vunpack.c.l.bf16 %v607
    %v624 = vunpack.c.l.bf16 %v608
    %v625 = vsel %vm56, %v609, -inf
    %v626 = vsel %vm56, %v610, -inf
    %v627 = vmax.f32 %v625, %v626
    %v628 = vrot.slane %v627, 4
    %v629 = vmax.f32 %v627, %v628
    %v630 = vrot.slane %v629, 2
    %v631 = vmax.f32 %v629, %v630
    %v632 = vrot.slane %v631, 1
    %v633 = vmax.f32 %v631, %v632
    %v634 = vsel %vm56, %v611, -inf
    %v635 = vsel %vm56, %v612, -inf
    %v636 = vmax.f32 %v634, %v635
    %v637 = vrot.slane %v636, 4
    %v638 = vmax.f32 %v636, %v637
    %v639 = vrot.slane %v638, 2
    %v640 = vmax.f32 %v638, %v639
    %v641 = vrot.slane %v640, 1
    %v642 = vmax.f32 %v640, %v641
    %v643 = vsel %vm56, %v613, -inf
    %v644 = vsel %vm56, %v614, -inf
    %v645 = vmax.f32 %v643, %v644
    %v646 = vrot.slane %v645, 4
    %v647 = vmax.f32 %v645, %v646
    %v648 = vrot.slane %v647, 2
    %v649 = vmax.f32 %v647, %v648
    %v650 = vrot.slane %v649, 1
    %v651 = vmax.f32 %v649, %v650
    %v652 = vsel %vm56, %v615, -inf
    %v653 = vsel %vm56, %v616, -inf
    %v654 = vmax.f32 %v652, %v653
    %v655 = vrot.slane %v654, 4
    %v656 = vmax.f32 %v654, %v655
    %v657 = vrot.slane %v656, 2
    %v658 = vmax.f32 %v656, %v657
    %v659 = vrot.slane %v658, 1
    %v660 = vmax.f32 %v658, %v659
    %v661 = vsel %vm56, %v617, -inf
    %v662 = vsel %vm56, %v618, -inf
    %v663 = vmax.f32 %v661, %v662
    %v664 = vrot.slane %v663, 4
    %v665 = vmax.f32 %v663, %v664
    %v666 = vrot.slane %v665, 2
    %v667 = vmax.f32 %v665, %v666
    %v668 = vrot.slane %v667, 1
    %v669 = vmax.f32 %v667, %v668
    %v670 = vsel %vm56, %v619, -inf
    %v671 = vsel %vm56, %v620, -inf
    %v672 = vmax.f32 %v670, %v671
    %v673 = vrot.slane %v672, 4
    %v674 = vmax.f32 %v672, %v673
    %v675 = vrot.slane %v674, 2
    %v676 = vmax.f32 %v674, %v675
    %v677 = vrot.slane %v676, 1
    %v678 = vmax.f32 %v676, %v677
    %v679 = vsel %vm56, %v621, -inf
    %v680 = vsel %vm56, %v622, -inf
    %v681 = vmax.f32 %v679, %v680
    %v682 = vrot.slane %v681, 4
    %v683 = vmax.f32 %v681, %v682
    %v684 = vrot.slane %v683, 2
    %v685 = vmax.f32 %v683, %v684
    %v686 = vrot.slane %v685, 1
    %v687 = vmax.f32 %v685, %v686
    %v688 = vsel %vm56, %v623, -inf
    %v689 = vsel %vm56, %v624, -inf
    %v690 = vmax.f32 %v688, %v689
    %v691 = vrot.slane %v690, 4
    %v692 = vmax.f32 %v690, %v691
    %v693 = vrot.slane %v692, 2
    %v694 = vmax.f32 %v692, %v693
    %v695 = vrot.slane %v694, 1
    %v696 = vmax.f32 %v694, %v695
    %v697 = vmax.f32 %v505, %v633
    %v698 = vmax.f32 %v506, %v642
    %v699 = vmax.f32 %v507, %v651
    %v700 = vmax.f32 %v508, %v660
    %v701 = vmax.f32 %v509, %v669
    %v702 = vmax.f32 %v510, %v678
    %v703 = vmax.f32 %v511, %v687
    %v704 = vmax.f32 %v512, %v696
    %v705 = vsel %vm56, %v609, 0.0
    %v706 = vsel %vm56, %v610, 0.0
    %v707 = vadd.f32 %v705, %v706
    %v708 = vrot.slane %v707, 4
    %v709 = vadd.f32 %v707, %v708
    %v710 = vrot.slane %v709, 2
    %v711 = vadd.f32 %v709, %v710
    %v712 = vrot.slane %v711, 1
    %v713 = vadd.f32 %v711, %v712
    %v714 = vsel %vm56, %v611, 0.0
    %v715 = vsel %vm56, %v612, 0.0
    %v716 = vadd.f32 %v714, %v715
    %v717 = vrot.slane %v716, 4
    %v718 = vadd.f32 %v716, %v717
    %v719 = vrot.slane %v718, 2
    %v720 = vadd.f32 %v718, %v719
    %v721 = vrot.slane %v720, 1
    %v722 = vadd.f32 %v720, %v721
    %v723 = vsel %vm56, %v613, 0.0
    %v724 = vsel %vm56, %v614, 0.0
    %v725 = vadd.f32 %v723, %v724
    %v726 = vrot.slane %v725, 4
    %v727 = vadd.f32 %v725, %v726
    %v728 = vrot.slane %v727, 2
    %v729 = vadd.f32 %v727, %v728
    %v730 = vrot.slane %v729, 1
    %v731 = vadd.f32 %v729, %v730
    %v732 = vsel %vm56, %v615, 0.0
    %v733 = vsel %vm56, %v616, 0.0
    %v734 = vadd.f32 %v732, %v733
    %v735 = vrot.slane %v734, 4
    %v736 = vadd.f32 %v734, %v735
    %v737 = vrot.slane %v736, 2
    %v738 = vadd.f32 %v736, %v737
    %v739 = vrot.slane %v738, 1
    %v740 = vadd.f32 %v738, %v739
    %v741 = vsel %vm56, %v617, 0.0
    %v742 = vsel %vm56, %v618, 0.0
    %v743 = vadd.f32 %v741, %v742
    %v744 = vrot.slane %v743, 4
    %v745 = vadd.f32 %v743, %v744
    %v746 = vrot.slane %v745, 2
    %v747 = vadd.f32 %v745, %v746
    %v748 = vrot.slane %v747, 1
    %v749 = vadd.f32 %v747, %v748
    %v750 = vsel %vm56, %v619, 0.0
    %v751 = vsel %vm56, %v620, 0.0
    %v752 = vadd.f32 %v750, %v751
    %v753 = vrot.slane %v752, 4
    %v754 = vadd.f32 %v752, %v753
    %v755 = vrot.slane %v754, 2
    %v756 = vadd.f32 %v754, %v755
    %v757 = vrot.slane %v756, 1
    %v758 = vadd.f32 %v756, %v757
    %v759 = vsel %vm56, %v621, 0.0
    %v760 = vsel %vm56, %v622, 0.0
    %v761 = vadd.f32 %v759, %v760
    %v762 = vrot.slane %v761, 4
    %v763 = vadd.f32 %v761, %v762
    %v764 = vrot.slane %v763, 2
    %v765 = vadd.f32 %v763, %v764
    %v766 = vrot.slane %v765, 1
    %v767 = vadd.f32 %v765, %v766
    %v768 = vsel %vm56, %v623, 0.0
    %v769 = vsel %vm56, %v624, 0.0
    %v770 = vadd.f32 %v768, %v769
    %v771 = vrot.slane %v770, 4
    %v772 = vadd.f32 %v770, %v771
    %v773 = vrot.slane %v772, 2
    %v774 = vadd.f32 %v772, %v773
    %v775 = vrot.slane %v774, 1
    %v776 = vadd.f32 %v774, %v775
    %v777 = vadd.f32 %v585, %v713
    %v778 = vadd.f32 %v586, %v722
    %v779 = vadd.f32 %v587, %v731
    %v780 = vadd.f32 %v588, %v740
    %v781 = vadd.f32 %v589, %v749
    %v782 = vadd.f32 %v590, %v758
    %v783 = vadd.f32 %v591, %v767
    %v784 = vadd.f32 %v592, %v776
    %v785 = vmul.f32 %v777, 0.015625
    %v786 = vmul.f32 %v778, 0.015625
    %v787 = vmul.f32 %v779, 0.015625
    %v788 = vmul.f32 %v780, 0.015625
    %v789 = vmul.f32 %v781, 0.015625
    %v790 = vmul.f32 %v782, 0.015625
    %v791 = vmul.f32 %v783, 0.015625
    %v792 = vmul.f32 %v784, 0.015625
    %v793 = vld [vmem:[%s1] sm:$0xff]
    %v794 = vld [vmem:[%s1 + $0x8] sm:$0xff]
    %v795 = vld [vmem:[%s1 + $0x10] sm:$0xff]
    %v796 = vld [vmem:[%s1 + $0x18] sm:$0xff]
    %v797 = vld [vmem:[%s2] sm:$0xff]
    %v798 = vld [vmem:[%s2 + $0x8] sm:$0xff]
    %v799 = vld [vmem:[%s2 + $0x10] sm:$0xff]
    %v800 = vld [vmem:[%s2 + $0x18] sm:$0xff]
    %vm809 = vcmask 1041409
    %v810 = vsel %vm809, %v786, %v785
    %vm811 = vcmask 1042434
    %v812 = vsel %vm811, %v787, %v810
    %vm813 = vcmask 1043459
    %v814 = vsel %vm813, %v788, %v812
    %vm815 = vcmask 1044484
    %v816 = vsel %vm815, %v789, %v814
    %vm817 = vcmask 1045509
    %v818 = vsel %vm817, %v790, %v816
    %vm819 = vcmask 1046534
    %v820 = vsel %vm819, %v791, %v818
    %vm821 = vcmask 1047559
    %v822 = vsel %vm821, %v792, %v820
    %v823 = vsel %vm56, %v822, 0
    %825 = vmatpush.msra.mxu0 0.0
    %826 = vmatpush.msra.mxu0 0.0
    %827 = vmatpush.msra.mxu0 0.0
    %828 = vmatpush.msra.mxu0 0.0
    %829 = vmatpush.msra.mxu0 0.0
    %830 = vmatpush.msra.mxu0 0.0
    %831 = vmatpush.msra.mxu0 0.0
    %832 = vmatpush.msra.mxu0 0.0
    %833 = vmatpush.msra.mxu0 0.0
    %834 = vmatpush.msra.mxu0 0.0
    %835 = vmatpush.msra.mxu0 0.0
    %836 = vmatpush.msra.mxu0 0.0
    %837 = vmatpush.msra.mxu0 %v800
    %838 = vmatpush.msra.mxu0 %v799
    %839 = vmatpush.msra.mxu0 %v798
    %840 = vmatpush.msra.mxu0 %v797
    %841 = vmatmul.f32.gmra.mxu0 %v823
    %v842 = vpop.f32.mrf.mxu0
    %v843 = vadd.f32 0.0, %v842
    %844 = vdwg.mxu0
    %v853 = vsel %vm809, %v698, %v697
    %v854 = vsel %vm811, %v699, %v853
    %v855 = vsel %vm813, %v700, %v854
    %v856 = vsel %vm815, %v701, %v855
    %v857 = vsel %vm817, %v702, %v856
    %v858 = vsel %vm819, %v703, %v857
    %v859 = vsel %vm821, %v704, %v858
    %v860 = vsel %vm56, %v859, 0
    %862 = vmatpush.msra.mxu0 0.0
    %863 = vmatpush.msra.mxu0 0.0
    %864 = vmatpush.msra.mxu0 0.0
    %865 = vmatpush.msra.mxu0 0.0
    %866 = vmatpush.msra.mxu0 0.0
    %867 = vmatpush.msra.mxu0 0.0
    %868 = vmatpush.msra.mxu0 0.0
    %869 = vmatpush.msra.mxu0 0.0
    %870 = vmatpush.msra.mxu0 0.0
    %871 = vmatpush.msra.mxu0 0.0
    %872 = vmatpush.msra.mxu0 0.0
    %873 = vmatpush.msra.mxu0 0.0
    %874 = vmatpush.msra.mxu0 %v796
    %875 = vmatpush.msra.mxu0 %v795
    %876 = vmatpush.msra.mxu0 %v794
    %877 = vmatpush.msra.mxu0 %v793
    %878 = vmatmul.f32.gmra.mxu0 %v860
    %v879 = vpop.f32.mrf.mxu0
    %v880 = vadd.f32 %v843, %v879
    %881 = vdwg.mxu0
    %v882 = vld [vmem:[%s3] sm:$0x1]
    %v884 = vperm.slane %v882, 0
    %v886 = vadd.f32 %v880, %v884
    %v887 = vmax.f32 %v886, 0.0
    %v888 = vld [vmem:[%s4] sm:$0xff]
    %v889 = vld [vmem:[%s4 + $0x8] sm:$0xff]
    %v890 = vld [vmem:[%s4 + $0x10] sm:$0xff]
    %v891 = vld [vmem:[%s4 + $0x18] sm:$0xff]
    %v892 = vld [vmem:[%s5] sm:$0x1]
    %v894 = vperm.slane %v892, 0
    %v897 = vsel %vm56, %v887, 0
    %899 = vmatpush.msra.mxu0 0.0
    %900 = vmatpush.msra.mxu0 0.0
    %901 = vmatpush.msra.mxu0 0.0
    %902 = vmatpush.msra.mxu0 0.0
    %903 = vmatpush.msra.mxu0 0.0
    %904 = vmatpush.msra.mxu0 0.0
    %905 = vmatpush.msra.mxu0 0.0
    %906 = vmatpush.msra.mxu0 0.0
    %907 = vmatpush.msra.mxu0 0.0
    %908 = vmatpush.msra.mxu0 0.0
    %909 = vmatpush.msra.mxu0 0.0
    %910 = vmatpush.msra.mxu0 0.0
    %911 = vmatpush.msra.mxu0 %v891
    %912 = vmatpush.msra.mxu0 %v890
    %913 = vmatpush.msra.mxu0 %v889
    %914 = vmatpush.msra.mxu0 %v888
    %915 = vmatmul.f32.gmra.mxu0 %v897
    %v916 = vpop.f32.mrf.mxu0
    %v917 = vadd.f32 %v894, %v916
    %918 = vdwg.mxu0
    %919 = vst [vmem:[#allocation2] sm:$0xff] %v917
    // Predicated region
    $region26: #{tpu_custom_call.1} parent=1 // pred_check
      _
    $region27: #{tpu_custom_call.1} parent=1 // pred_check_branch
      %921 = sbr.rel (0) target = $region29
    $region28: #{tpu_custom_call.1} parent=1 // pred_region
      %923 = vsyncadd [#allocation3], 0
      %s925 = sshll.u32 [#allocation2], 4
      %s926 = int_to_ptr.vmem [resolvable:$true] %s925
      %s927 = sshll.u32 %s6, 4
      %s928 = int_to_ptr.hbm [resolvable:$true] %s927
      %930 = dma.vmem_to_hbm [thread:$0]  %s926, 128, %s928, [#allocation3]
    $region29: #{tpu_custom_call.1} parent=1 // pred_fallthru
      _
    // Predicated region
    $region30: #{tpu_custom_call.1} parent=1 // pred_check
      _
    $region31: #{tpu_custom_call.1} parent=1 // pred_check_branch
      %932 = sbr.rel (0) target = $region33
    $region32: #{tpu_custom_call.1} parent=1 // pred_region
      %934 = dma.done [#allocation3], 128
    $region33: #{tpu_custom_call.1} parent=1 // pred_fallthru
      _
    %935 = vsyncpa [#allocation3], 1

// kernel: tpu_custom_call.1
$region0: #{tpu_custom_call.1}
  #allocation0 [shape = 'u32[]', space=smem, size = 0x4, offset = 0x4, fixed_abs, tag = 'smem constant byte address 0x4 - core index']
  #allocation1 [shape = 'u32[72,128]{1,0:T(1,128)}', space=vmem, size = 0x9000, scoped, tag = 'internal scratch']
  %s0 = inlined_call_operand.vmem [shape: bf16[8,64,32], index: 0, kind: input, shape index: {}]
  %s1 = inlined_call_operand.vmem [shape: f32[32,32], index: 1, kind: input, shape index: {}]
  %s2 = inlined_call_operand.vmem [shape: f32[32,32], index: 2, kind: input, shape index: {}]
  %s3 = inlined_call_operand.vmem [shape: f32[1,32], index: 3, kind: input, shape index: {}]
  %s4 = inlined_call_operand.vmem [shape: f32[32,128], index: 4, kind: input, shape index: {}]
  %s5 = inlined_call_operand.vmem [shape: f32[1,128], index: 5, kind: input, shape index: {}]
  %s6 = inlined_call_operand.hbm [shape: f32[8,128], index: 6, kind: output, shape index: {}]
  %s7 = sld [smem:[#allocation0]]
  $region34: #{tpu_custom_call.1} parent=0
    _
  %s9 = ssub.s32 1, %s7
  %s10 = scalar_select 0, %s9, %s7
  $region1: #{tpu_custom_call.1} parent=0
    #allocation2 [shape = 'u8[4096]{0}', space=vmem, size = 0x1000, scoped, tag = 'output window, operand 0, single buffered']
    #allocation3 [shape = 's32[1]{0}', space=sflag, size = 0x4, scoped, tag = 'scoped memory for tpu_custom_call.1']
    %11 = vsyncpa [#allocation3], 0
    // Predicated region
    $region2: #{tpu_custom_call.1} parent=1 // pred_check
      _
    $region3: #{tpu_custom_call.1} parent=1 // pred_check_branch
      %13 = sbr.rel (0) target = $region5
    $region4: #{tpu_custom_call.1} parent=1 // pred_region
      _
    $region5: #{tpu_custom_call.1} parent=1 // pred_fallthru
      _
    // Predicated region
    $region6: #{tpu_custom_call.1} parent=1 // pred_check
      _
    $region7: #{tpu_custom_call.1} parent=1 // pred_check_branch
      %15 = sbr.rel (0) target = $region9
    $region8: #{tpu_custom_call.1} parent=1 // pred_region
      _
    $region9: #{tpu_custom_call.1} parent=1 // pred_fallthru
      _
    // Predicated region
    $region10: #{tpu_custom_call.1} parent=1 // pred_check
      _
    $region11: #{tpu_custom_call.1} parent=1 // pred_check_branch
      %17 = sbr.rel (0) target = $region13
    $region12: #{tpu_custom_call.1} parent=1 // pred_region
      _
    $region13: #{tpu_custom_call.1} parent=1 // pred_fallthru
      _
    // Predicated region
    $region14: #{tpu_custom_call.1} parent=1 // pred_check
      _
    $region15: #{tpu_custom_call.1} parent=1 // pred_check_branch
      %19 = sbr.rel (0) target = $region17
    $region16: #{tpu_custom_call.1} parent=1 // pred_region
      _
    $region17: #{tpu_custom_call.1} parent=1 // pred_fallthru
      _
    // Predicated region
    $region18: #{tpu_custom_call.1} parent=1 // pred_check
      _
    $region19: #{tpu_custom_call.1} parent=1 // pred_check_branch
      %21 = sbr.rel (0) target = $region21
    $region20: #{tpu_custom_call.1} parent=1 // pred_region
      _
    $region21: #{tpu_custom_call.1} parent=1 // pred_fallthru
      _
    // Predicated region
    $region22: #{tpu_custom_call.1} parent=1 // pred_check
      _
    $region23: #{tpu_custom_call.1} parent=1 // pred_check_branch
      %23 = sbr.rel (0) target = $region25
    $region24: #{tpu_custom_call.1} parent=1 // pred_region
      _
    $region25: #{tpu_custom_call.1} parent=1 // pred_fallthru
      _
    %v24 = vld [vmem:[%s0] sm:$0xf]
    %v25 = vld [vmem:[%s0 + $0x4] sm:$0xf]
    %v26 = vld [vmem:[%s0 + $0x20] sm:$0xf]
    %v27 = vld [vmem:[%s0 + $0x24] sm:$0xf]
    %v28 = vld [vmem:[%s0 + $0x40] sm:$0xf]
    %v29 = vld [vmem:[%s0 + $0x44] sm:$0xf]
    %v30 = vld [vmem:[%s0 + $0x60] sm:$0xf]
    %v31 = vld [vmem:[%s0 + $0x64] sm:$0xf]
    %v32 = vld [vmem:[%s0 + $0x80] sm:$0xf]
    %v33 = vld [vmem:[%s0 + $0x84] sm:$0xf]
    %v34 = vld [vmem:[%s0 + $0xa0] sm:$0xf]
    %v35 = vld [vmem:[%s0 + $0xa4] sm:$0xf]
    %v36 = vld [vmem:[%s0 + $0xc0] sm:$0xf]
    %v37 = vld [vmem:[%s0 + $0xc4] sm:$0xf]
    %v38 = vld [vmem:[%s0 + $0xe0] sm:$0xf]
    %v39 = vld [vmem:[%s0 + $0xe4] sm:$0xf]
    %v40 = vunpack.c.l.bf16 %v24
    %v41 = vunpack.c.l.bf16 %v25
    %v42 = vunpack.c.l.bf16 %v26
    %v43 = vunpack.c.l.bf16 %v27
    %v44 = vunpack.c.l.bf16 %v28
    %v45 = vunpack.c.l.bf16 %v29
    %v46 = vunpack.c.l.bf16 %v30
    %v47 = vunpack.c.l.bf16 %v31
    %v48 = vunpack.c.l.bf16 %v32
    %v49 = vunpack.c.l.bf16 %v33
    %v50 = vunpack.c.l.bf16 %v34
    %v51 = vunpack.c.l.bf16 %v35
    %v52 = vunpack.c.l.bf16 %v36
    %v53 = vunpack.c.l.bf16 %v37
    %v54 = vunpack.c.l.bf16 %v38
    %v55 = vunpack.c.l.bf16 %v39
    %vm56 = vcmask 261120
    %v57 = vsel %vm56, %v40, -inf
    %v58 = vsel %vm56, %v41, -inf
    %v59 = vmax.f32 %v57, %v58
    %v60 = vrot.slane %v59, 4
    %v61 = vmax.f32 %v59, %v60
    %v62 = vrot.slane %v61, 2
    %v63 = vmax.f32 %v61, %v62
    %v64 = vrot.slane %v63, 1
    %v65 = vmax.f32 %v63, %v64
    %v66 = vsel %vm56, %v42, -inf
    %v67 = vsel %vm56, %v43, -inf
    %v68 = vmax.f32 %v66, %v67
    %v69 = vrot.slane %v68, 4
    %v70 = vmax.f32 %v68, %v69
    %v71 = vrot.slane %v70, 2
    %v72 = vmax.f32 %v70, %v71
    %v73 = vrot.slane %v72, 1
    %v74 = vmax.f32 %v72, %v73
    %v75 = vsel %vm56, %v44, -inf
    %v76 = vsel %vm56, %v45, -inf
    %v77 = vmax.f32 %v75, %v76
    %v78 = vrot.slane %v77, 4
    %v79 = vmax.f32 %v77, %v78
    %v80 = vrot.slane %v79, 2
    %v81 = vmax.f32 %v79, %v80
    %v82 = vrot.slane %v81, 1
    %v83 = vmax.f32 %v81, %v82
    %v84 = vsel %vm56, %v46, -inf
    %v85 = vsel %vm56, %v47, -inf
    %v86 = vmax.f32 %v84, %v85
    %v87 = vrot.slane %v86, 4
    %v88 = vmax.f32 %v86, %v87
    %v89 = vrot.slane %v88, 2
    %v90 = vmax.f32 %v88, %v89
    %v91 = vrot.slane %v90, 1
    %v92 = vmax.f32 %v90, %v91
    %v93 = vsel %vm56, %v48, -inf
    %v94 = vsel %vm56, %v49, -inf
    %v95 = vmax.f32 %v93, %v94
    %v96 = vrot.slane %v95, 4
    %v97 = vmax.f32 %v95, %v96
    %v98 = vrot.slane %v97, 2
    %v99 = vmax.f32 %v97, %v98
    %v100 = vrot.slane %v99, 1
    %v101 = vmax.f32 %v99, %v100
    %v102 = vsel %vm56, %v50, -inf
    %v103 = vsel %vm56, %v51, -inf
    %v104 = vmax.f32 %v102, %v103
    %v105 = vrot.slane %v104, 4
    %v106 = vmax.f32 %v104, %v105
    %v107 = vrot.slane %v106, 2
    %v108 = vmax.f32 %v106, %v107
    %v109 = vrot.slane %v108, 1
    %v110 = vmax.f32 %v108, %v109
    %v111 = vsel %vm56, %v52, -inf
    %v112 = vsel %vm56, %v53, -inf
    %v113 = vmax.f32 %v111, %v112
    %v114 = vrot.slane %v113, 4
    %v115 = vmax.f32 %v113, %v114
    %v116 = vrot.slane %v115, 2
    %v117 = vmax.f32 %v115, %v116
    %v118 = vrot.slane %v117, 1
    %v119 = vmax.f32 %v117, %v118
    %v120 = vsel %vm56, %v54, -inf
    %v121 = vsel %vm56, %v55, -inf
    %v122 = vmax.f32 %v120, %v121
    %v123 = vrot.slane %v122, 4
    %v124 = vmax.f32 %v122, %v123
    %v125 = vrot.slane %v124, 2
    %v126 = vmax.f32 %v124, %v125
    %v127 = vrot.slane %v126, 1
    %v128 = vmax.f32 %v126, %v127
    %v129 = vsel %vm56, %v40, 0.0
    %v130 = vsel %vm56, %v41, 0.0
    %v131 = vadd.f32 %v129, %v130
    %v132 = vrot.slane %v131, 4
    %v133 = vadd.f32 %v131, %v132
    %v134 = vrot.slane %v133, 2
    %v135 = vadd.f32 %v133, %v134
    %v136 = vrot.slane %v135, 1
    %v137 = vadd.f32 %v135, %v136
    %v138 = vsel %vm56, %v42, 0.0
    %v139 = vsel %vm56, %v43, 0.0
    %v140 = vadd.f32 %v138, %v139
    %v141 = vrot.slane %v140, 4
    %v142 = vadd.f32 %v140, %v141
    %v143 = vrot.slane %v142, 2
    %v144 = vadd.f32 %v142, %v143
    %v145 = vrot.slane %v144, 1
    %v146 = vadd.f32 %v144, %v145
    %v147 = vsel %vm56, %v44, 0.0
    %v148 = vsel %vm56, %v45, 0.0
    %v149 = vadd.f32 %v147, %v148
    %v150 = vrot.slane %v149, 4
    %v151 = vadd.f32 %v149, %v150
    %v152 = vrot.slane %v151, 2
    %v153 = vadd.f32 %v151, %v152
    %v154 = vrot.slane %v153, 1
    %v155 = vadd.f32 %v153, %v154
    %v156 = vsel %vm56, %v46, 0.0
    %v157 = vsel %vm56, %v47, 0.0
    %v158 = vadd.f32 %v156, %v157
    %v159 = vrot.slane %v158, 4
    %v160 = vadd.f32 %v158, %v159
    %v161 = vrot.slane %v160, 2
    %v162 = vadd.f32 %v160, %v161
    %v163 = vrot.slane %v162, 1
    %v164 = vadd.f32 %v162, %v163
    %v165 = vsel %vm56, %v48, 0.0
    %v166 = vsel %vm56, %v49, 0.0
    %v167 = vadd.f32 %v165, %v166
    %v168 = vrot.slane %v167, 4
    %v169 = vadd.f32 %v167, %v168
    %v170 = vrot.slane %v169, 2
    %v171 = vadd.f32 %v169, %v170
    %v172 = vrot.slane %v171, 1
    %v173 = vadd.f32 %v171, %v172
    %v174 = vsel %vm56, %v50, 0.0
    %v175 = vsel %vm56, %v51, 0.0
    %v176 = vadd.f32 %v174, %v175
    %v177 = vrot.slane %v176, 4
    %v178 = vadd.f32 %v176, %v177
    %v179 = vrot.slane %v178, 2
    %v180 = vadd.f32 %v178, %v179
    %v181 = vrot.slane %v180, 1
    %v182 = vadd.f32 %v180, %v181
    %v183 = vsel %vm56, %v52, 0.0
    %v184 = vsel %vm56, %v53, 0.0
    %v185 = vadd.f32 %v183, %v184
    %v186 = vrot.slane %v185, 4
    %v187 = vadd.f32 %v185, %v186
    %v188 = vrot.slane %v187, 2
    %v189 = vadd.f32 %v187, %v188
    %v190 = vrot.slane %v189, 1
    %v191 = vadd.f32 %v189, %v190
    %v192 = vsel %vm56, %v54, 0.0
    %v193 = vsel %vm56, %v55, 0.0
    %v194 = vadd.f32 %v192, %v193
    %v195 = vrot.slane %v194, 4
    %v196 = vadd.f32 %v194, %v195
    %v197 = vrot.slane %v196, 2
    %v198 = vadd.f32 %v196, %v197
    %v199 = vrot.slane %v198, 1
    %v200 = vadd.f32 %v198, %v199
    %v201 = vadd.f32 %v137, 0.0
    %v202 = vadd.f32 %v146, 0.0
    %v203 = vadd.f32 %v155, 0.0
    %v204 = vadd.f32 %v164, 0.0
    %v205 = vadd.f32 %v173, 0.0
    %v206 = vadd.f32 %v182, 0.0
    %v207 = vadd.f32 %v191, 0.0
    %v208 = vadd.f32 %v200, 0.0
    %v209 = vld [vmem:[%s0 + $0x8] sm:$0xf]
    %v210 = vld [vmem:[%s0 + $0xc] sm:$0xf]
    %v211 = vld [vmem:[%s0 + $0x28] sm:$0xf]
    %v212 = vld [vmem:[%s0 + $0x2c] sm:$0xf]
    %v213 = vld [vmem:[%s0 + $0x48] sm:$0xf]
    %v214 = vld [vmem:[%s0 + $0x4c] sm:$0xf]
    %v215 = vld [vmem:[%s0 + $0x68] sm:$0xf]
    %v216 = vld [vmem:[%s0 + $0x6c] sm:$0xf]
    %v217 = vld [vmem:[%s0 + $0x88] sm:$0xf]
    %v218 = vld [vmem:[%s0 + $0x8c] sm:$0xf]
    %v219 = vld [vmem:[%s0 + $0xa8] sm:$0xf]
    %v220 = vld [vmem:[%s0 + $0xac] sm:$0xf]
    %v221 = vld [vmem:[%s0 + $0xc8] sm:$0xf]
    %v222 = vld [vmem:[%s0 + $0xcc] sm:$0xf]
    %v223 = vld [vmem:[%s0 + $0xe8] sm:$0xf]
    %v224 = vld [vmem:[%s0 + $0xec] sm:$0xf]
    %v225 = vunpack.c.l.bf16 %v209
    %v226 = vunpack.c.l.bf16 %v210
    %v227 = vunpack.c.l.bf16 %v211
    %v228 = vunpack.c.l.bf16 %v212
    %v229 = vunpack.c.l.bf16 %v213
    %v230 = vunpack.c.l.bf16 %v214
    %v231 = vunpack.c.l.bf16 %v215
    %v232 = vunpack.c.l.bf16 %v216
    %v233 = vunpack.c.l.bf16 %v217
    %v234 = vunpack.c.l.bf16 %v218
    %v235 = vunpack.c.l.bf16 %v219
    %v236 = vunpack.c.l.bf16 %v220
    %v237 = vunpack.c.l.bf16 %v221
    %v238 = vunpack.c.l.bf16 %v222
    %v239 = vunpack.c.l.bf16 %v223
    %v240 = vunpack.c.l.bf16 %v224
    %v241 = vsel %vm56, %v225, -inf
    %v242 = vsel %vm56, %v226, -inf
    %v243 = vmax.f32 %v241, %v242
    %v244 = vrot.slane %v243, 4
    %v245 = vmax.f32 %v243, %v244
    %v246 = vrot.slane %v245, 2
    %v247 = vmax.f32 %v245, %v246
    %v248 = vrot.slane %v247, 1
    %v249 = vmax.f32 %v247, %v248
    %v250 = vsel %vm56, %v227, -inf
    %v251 = vsel %vm56, %v228, -inf
    %v252 = vmax.f32 %v250, %v251
    %v253 = vrot.slane %v252, 4
    %v254 = vmax.f32 %v252, %v253
    %v255 = vrot.slane %v254, 2
    %v256 = vmax.f32 %v254, %v255
    %v257 = vrot.slane %v256, 1
    %v258 = vmax.f32 %v256, %v257
    %v259 = vsel %vm56, %v229, -inf
    %v260 = vsel %vm56, %v230, -inf
    %v261 = vmax.f32 %v259, %v260
    %v262 = vrot.slane %v261, 4
    %v263 = vmax.f32 %v261, %v262
    %v264 = vrot.slane %v263, 2
    %v265 = vmax.f32 %v263, %v264
    %v266 = vrot.slane %v265, 1
    %v267 = vmax.f32 %v265, %v266
    %v268 = vsel %vm56, %v231, -inf
    %v269 = vsel %vm56, %v232, -inf
    %v270 = vmax.f32 %v268, %v269
    %v271 = vrot.slane %v270, 4
    %v272 = vmax.f32 %v270, %v271
    %v273 = vrot.slane %v272, 2
    %v274 = vmax.f32 %v272, %v273
    %v275 = vrot.slane %v274, 1
    %v276 = vmax.f32 %v274, %v275
    %v277 = vsel %vm56, %v233, -inf
    %v278 = vsel %vm56, %v234, -inf
    %v279 = vmax.f32 %v277, %v278
    %v280 = vrot.slane %v279, 4
    %v281 = vmax.f32 %v279, %v280
    %v282 = vrot.slane %v281, 2
    %v283 = vmax.f32 %v281, %v282
    %v284 = vrot.slane %v283, 1
    %v285 = vmax.f32 %v283, %v284
    %v286 = vsel %vm56, %v235, -inf
    %v287 = vsel %vm56, %v236, -inf
    %v288 = vmax.f32 %v286, %v287
    %v289 = vrot.slane %v288, 4
    %v290 = vmax.f32 %v288, %v289
    %v291 = vrot.slane %v290, 2
    %v292 = vmax.f32 %v290, %v291
    %v293 = vrot.slane %v292, 1
    %v294 = vmax.f32 %v292, %v293
    %v295 = vsel %vm56, %v237, -inf
    %v296 = vsel %vm56, %v238, -inf
    %v297 = vmax.f32 %v295, %v296
    %v298 = vrot.slane %v297, 4
    %v299 = vmax.f32 %v297, %v298
    %v300 = vrot.slane %v299, 2
    %v301 = vmax.f32 %v299, %v300
    %v302 = vrot.slane %v301, 1
    %v303 = vmax.f32 %v301, %v302
    %v304 = vsel %vm56, %v239, -inf
    %v305 = vsel %vm56, %v240, -inf
    %v306 = vmax.f32 %v304, %v305
    %v307 = vrot.slane %v306, 4
    %v308 = vmax.f32 %v306, %v307
    %v309 = vrot.slane %v308, 2
    %v310 = vmax.f32 %v308, %v309
    %v311 = vrot.slane %v310, 1
    %v312 = vmax.f32 %v310, %v311
    %v313 = vmax.f32 %v65, %v249
    %v314 = vmax.f32 %v74, %v258
    %v315 = vmax.f32 %v83, %v267
    %v316 = vmax.f32 %v92, %v276
    %v317 = vmax.f32 %v101, %v285
    %v318 = vmax.f32 %v110, %v294
    %v319 = vmax.f32 %v119, %v303
    %v320 = vmax.f32 %v128, %v312
    %v321 = vsel %vm56, %v225, 0.0
    %v322 = vsel %vm56, %v226, 0.0
    %v323 = vadd.f32 %v321, %v322
    %v324 = vrot.slane %v323, 4
    %v325 = vadd.f32 %v323, %v324
    %v326 = vrot.slane %v325, 2
    %v327 = vadd.f32 %v325, %v326
    %v328 = vrot.slane %v327, 1
    %v329 = vadd.f32 %v327, %v328
    %v330 = vsel %vm56, %v227, 0.0
    %v331 = vsel %vm56, %v228, 0.0
    %v332 = vadd.f32 %v330, %v331
    %v333 = vrot.slane %v332, 4
    %v334 = vadd.f32 %v332, %v333
    %v335 = vrot.slane %v334, 2
    %v336 = vadd.f32 %v334, %v335
    %v337 = vrot.slane %v336, 1
    %v338 = vadd.f32 %v336, %v337
    %v339 = vsel %vm56, %v229, 0.0
    %v340 = vsel %vm56, %v230, 0.0
    %v341 = vadd.f32 %v339, %v340
    %v342 = vrot.slane %v341, 4
    %v343 = vadd.f32 %v341, %v342
    %v344 = vrot.slane %v343, 2
    %v345 = vadd.f32 %v343, %v344
    %v346 = vrot.slane %v345, 1
    %v347 = vadd.f32 %v345, %v346
    %v348 = vsel %vm56, %v231, 0.0
    %v349 = vsel %vm56, %v232, 0.0
    %v350 = vadd.f32 %v348, %v349
    %v351 = vrot.slane %v350, 4
    %v352 = vadd.f32 %v350, %v351
    %v353 = vrot.slane %v352, 2
    %v354 = vadd.f32 %v352, %v353
    %v355 = vrot.slane %v354, 1
    %v356 = vadd.f32 %v354, %v355
    %v357 = vsel %vm56, %v233, 0.0
    %v358 = vsel %vm56, %v234, 0.0
    %v359 = vadd.f32 %v357, %v358
    %v360 = vrot.slane %v359, 4
    %v361 = vadd.f32 %v359, %v360
    %v362 = vrot.slane %v361, 2
    %v363 = vadd.f32 %v361, %v362
    %v364 = vrot.slane %v363, 1
    %v365 = vadd.f32 %v363, %v364
    %v366 = vsel %vm56, %v235, 0.0
    %v367 = vsel %vm56, %v236, 0.0
    %v368 = vadd.f32 %v366, %v367
    %v369 = vrot.slane %v368, 4
    %v370 = vadd.f32 %v368, %v369
    %v371 = vrot.slane %v370, 2
    %v372 = vadd.f32 %v370, %v371
    %v373 = vrot.slane %v372, 1
    %v374 = vadd.f32 %v372, %v373
    %v375 = vsel %vm56, %v237, 0.0
    %v376 = vsel %vm56, %v238, 0.0
    %v377 = vadd.f32 %v375, %v376
    %v378 = vrot.slane %v377, 4
    %v379 = vadd.f32 %v377, %v378
    %v380 = vrot.slane %v379, 2
    %v381 = vadd.f32 %v379, %v380
    %v382 = vrot.slane %v381, 1
    %v383 = vadd.f32 %v381, %v382
    %v384 = vsel %vm56, %v239, 0.0
    %v385 = vsel %vm56, %v240, 0.0
    %v386 = vadd.f32 %v384, %v385
    %v387 = vrot.slane %v386, 4
    %v388 = vadd.f32 %v386, %v387
    %v389 = vrot.slane %v388, 2
    %v390 = vadd.f32 %v388, %v389
    %v391 = vrot.slane %v390, 1
    %v392 = vadd.f32 %v390, %v391
    %v393 = vadd.f32 %v201, %v329
    %v394 = vadd.f32 %v202, %v338
    %v395 = vadd.f32 %v203, %v347
    %v396 = vadd.f32 %v204, %v356
    %v397 = vadd.f32 %v205, %v365
    %v398 = vadd.f32 %v206, %v374
    %v399 = vadd.f32 %v207, %v383
    %v400 = vadd.f32 %v208, %v392
    %v401 = vld [vmem:[%s0 + $0x10] sm:$0xf]
    %v402 = vld [vmem:[%s0 + $0x14] sm:$0xf]
    %v403 = vld [vmem:[%s0 + $0x30] sm:$0xf]
    %v404 = vld [vmem:[%s0 + $0x34] sm:$0xf]
    %v405 = vld [vmem:[%s0 + $0x50] sm:$0xf]
    %v406 = vld [vmem:[%s0 + $0x54] sm:$0xf]
    %v407 = vld [vmem:[%s0 + $0x70] sm:$0xf]
    %v408 = vld [vmem:[%s0 + $0x74] sm:$0xf]
    %v409 = vld [vmem:[%s0 + $0x90] sm:$0xf]
    %v410 = vld [vmem:[%s0 + $0x94] sm:$0xf]
    %v411 = vld [vmem:[%s0 + $0xb0] sm:$0xf]
    %v412 = vld [vmem:[%s0 + $0xb4] sm:$0xf]
    %v413 = vld [vmem:[%s0 + $0xd0] sm:$0xf]
    %v414 = vld [vmem:[%s0 + $0xd4] sm:$0xf]
    %v415 = vld [vmem:[%s0 + $0xf0] sm:$0xf]
    %v416 = vld [vmem:[%s0 + $0xf4] sm:$0xf]
    %v417 = vunpack.c.l.bf16 %v401
    %v418 = vunpack.c.l.bf16 %v402
    %v419 = vunpack.c.l.bf16 %v403
    %v420 = vunpack.c.l.bf16 %v404
    %v421 = vunpack.c.l.bf16 %v405
    %v422 = vunpack.c.l.bf16 %v406
    %v423 = vunpack.c.l.bf16 %v407
    %v424 = vunpack.c.l.bf16 %v408
    %v425 = vunpack.c.l.bf16 %v409
    %v426 = vunpack.c.l.bf16 %v410
    %v427 = vunpack.c.l.bf16 %v411
    %v428 = vunpack.c.l.bf16 %v412
    %v429 = vunpack.c.l.bf16 %v413
    %v430 = vunpack.c.l.bf16 %v414
    %v431 = vunpack.c.l.bf16 %v415
    %v432 = vunpack.c.l.bf16 %v416
    %v433 = vsel %vm56, %v417, -inf
    %v434 = vsel %vm56, %v418, -inf
    %v435 = vmax.f32 %v433, %v434
    %v436 = vrot.slane %v435, 4
    %v437 = vmax.f32 %v435, %v436
    %v438 = vrot.slane %v437, 2
    %v439 = vmax.f32 %v437, %v438
    %v440 = vrot.slane %v439, 1
    %v441 = vmax.f32 %v439, %v440
    %v442 = vsel %vm56, %v419, -inf
    %v443 = vsel %vm56, %v420, -inf
    %v444 = vmax.f32 %v442, %v443
    %v445 = vrot.slane %v444, 4
    %v446 = vmax.f32 %v444, %v445
    %v447 = vrot.slane %v446, 2
    %v448 = vmax.f32 %v446, %v447
    %v449 = vrot.slane %v448, 1
    %v450 = vmax.f32 %v448, %v449
    %v451 = vsel %vm56, %v421, -inf
    %v452 = vsel %vm56, %v422, -inf
    %v453 = vmax.f32 %v451, %v452
    %v454 = vrot.slane %v453, 4
    %v455 = vmax.f32 %v453, %v454
    %v456 = vrot.slane %v455, 2
    %v457 = vmax.f32 %v455, %v456
    %v458 = vrot.slane %v457, 1
    %v459 = vmax.f32 %v457, %v458
    %v460 = vsel %vm56, %v423, -inf
    %v461 = vsel %vm56, %v424, -inf
    %v462 = vmax.f32 %v460, %v461
    %v463 = vrot.slane %v462, 4
    %v464 = vmax.f32 %v462, %v463
    %v465 = vrot.slane %v464, 2
    %v466 = vmax.f32 %v464, %v465
    %v467 = vrot.slane %v466, 1
    %v468 = vmax.f32 %v466, %v467
    %v469 = vsel %vm56, %v425, -inf
    %v470 = vsel %vm56, %v426, -inf
    %v471 = vmax.f32 %v469, %v470
    %v472 = vrot.slane %v471, 4
    %v473 = vmax.f32 %v471, %v472
    %v474 = vrot.slane %v473, 2
    %v475 = vmax.f32 %v473, %v474
    %v476 = vrot.slane %v475, 1
    %v477 = vmax.f32 %v475, %v476
    %v478 = vsel %vm56, %v427, -inf
    %v479 = vsel %vm56, %v428, -inf
    %v480 = vmax.f32 %v478, %v479
    %v481 = vrot.slane %v480, 4
    %v482 = vmax.f32 %v480, %v481
    %v483 = vrot.slane %v482, 2
    %v484 = vmax.f32 %v482, %v483
    %v485 = vrot.slane %v484, 1
    %v486 = vmax.f32 %v484, %v485
    %v487 = vsel %vm56, %v429, -inf
    %v488 = vsel %vm56, %v430, -inf
    %v489 = vmax.f32 %v487, %v488
    %v490 = vrot.slane %v489, 4
    %v491 = vmax.f32 %v489, %v490
    %v492 = vrot.slane %v491, 2
    %v493 = vmax.f32 %v491, %v492
    %v494 = vrot.slane %v493, 1
    %v495 = vmax.f32 %v493, %v494
    %v496 = vsel %vm56, %v431, -inf
    %v497 = vsel %vm56, %v432, -inf
    %v498 = vmax.f32 %v496, %v497
    %v499 = vrot.slane %v498, 4
    %v500 = vmax.f32 %v498, %v499
    %v501 = vrot.slane %v500, 2
    %v502 = vmax.f32 %v500, %v501
    %v503 = vrot.slane %v502, 1
    %v504 = vmax.f32 %v502, %v503
    %v505 = vmax.f32 %v313, %v441
    %v506 = vmax.f32 %v314, %v450
    %v507 = vmax.f32 %v315, %v459
    %v508 = vmax.f32 %v316, %v468
    %v509 = vmax.f32 %v317, %v477
    %v510 = vmax.f32 %v318, %v486
    %v511 = vmax.f32 %v319, %v495
    %v512 = vmax.f32 %v320, %v504
    %v513 = vsel %vm56, %v417, 0.0
    %v514 = vsel %vm56, %v418, 0.0
    %v515 = vadd.f32 %v513, %v514
    %v516 = vrot.slane %v515, 4
    %v517 = vadd.f32 %v515, %v516
    %v518 = vrot.slane %v517, 2
    %v519 = vadd.f32 %v517, %v518
    %v520 = vrot.slane %v519, 1
    %v521 = vadd.f32 %v519, %v520
    %v522 = vsel %vm56, %v419, 0.0
    %v523 = vsel %vm56, %v420, 0.0
    %v524 = vadd.f32 %v522, %v523
    %v525 = vrot.slane %v524, 4
    %v526 = vadd.f32 %v524, %v525
    %v527 = vrot.slane %v526, 2
    %v528 = vadd.f32 %v526, %v527
    %v529 = vrot.slane %v528, 1
    %v530 = vadd.f32 %v528, %v529
    %v531 = vsel %vm56, %v421, 0.0
    %v532 = vsel %vm56, %v422, 0.0
    %v533 = vadd.f32 %v531, %v532
    %v534 = vrot.slane %v533, 4
    %v535 = vadd.f32 %v533, %v534
    %v536 = vrot.slane %v535, 2
    %v537 = vadd.f32 %v535, %v536
    %v538 = vrot.slane %v537, 1
    %v539 = vadd.f32 %v537, %v538
    %v540 = vsel %vm56, %v423, 0.0
    %v541 = vsel %vm56, %v424, 0.0
    %v542 = vadd.f32 %v540, %v541
    %v543 = vrot.slane %v542, 4
    %v544 = vadd.f32 %v542, %v543
    %v545 = vrot.slane %v544, 2
    %v546 = vadd.f32 %v544, %v545
    %v547 = vrot.slane %v546, 1
    %v548 = vadd.f32 %v546, %v547
    %v549 = vsel %vm56, %v425, 0.0
    %v550 = vsel %vm56, %v426, 0.0
    %v551 = vadd.f32 %v549, %v550
    %v552 = vrot.slane %v551, 4
    %v553 = vadd.f32 %v551, %v552
    %v554 = vrot.slane %v553, 2
    %v555 = vadd.f32 %v553, %v554
    %v556 = vrot.slane %v555, 1
    %v557 = vadd.f32 %v555, %v556
    %v558 = vsel %vm56, %v427, 0.0
    %v559 = vsel %vm56, %v428, 0.0
    %v560 = vadd.f32 %v558, %v559
    %v561 = vrot.slane %v560, 4
    %v562 = vadd.f32 %v560, %v561
    %v563 = vrot.slane %v562, 2
    %v564 = vadd.f32 %v562, %v563
    %v565 = vrot.slane %v564, 1
    %v566 = vadd.f32 %v564, %v565
    %v567 = vsel %vm56, %v429, 0.0
    %v568 = vsel %vm56, %v430, 0.0
    %v569 = vadd.f32 %v567, %v568
    %v570 = vrot.slane %v569, 4
    %v571 = vadd.f32 %v569, %v570
    %v572 = vrot.slane %v571, 2
    %v573 = vadd.f32 %v571, %v572
    %v574 = vrot.slane %v573, 1
    %v575 = vadd.f32 %v573, %v574
    %v576 = vsel %vm56, %v431, 0.0
    %v577 = vsel %vm56, %v432, 0.0
    %v578 = vadd.f32 %v576, %v577
    %v579 = vrot.slane %v578, 4
    %v580 = vadd.f32 %v578, %v579
    %v581 = vrot.slane %v580, 2
    %v582 = vadd.f32 %v580, %v581
    %v583 = vrot.slane %v582, 1
    %v584 = vadd.f32 %v582, %v583
    %v585 = vadd.f32 %v393, %v521
    %v586 = vadd.f32 %v394, %v530
    %v587 = vadd.f32 %v395, %v539
    %v588 = vadd.f32 %v396, %v548
    %v589 = vadd.f32 %v397, %v557
    %v590 = vadd.f32 %v398, %v566
    %v591 = vadd.f32 %v399, %v575
    %v592 = vadd.f32 %v400, %v584
    %v593 = vld [vmem:[%s0 + $0x18] sm:$0xf]
    %v594 = vld [vmem:[%s0 + $0x1c] sm:$0xf]
    %v595 = vld [vmem:[%s0 + $0x38] sm:$0xf]
    %v596 = vld [vmem:[%s0 + $0x3c] sm:$0xf]
    %v597 = vld [vmem:[%s0 + $0x58] sm:$0xf]
    %v598 = vld [vmem:[%s0 + $0x5c] sm:$0xf]
    %v599 = vld [vmem:[%s0 + $0x78] sm:$0xf]
    %v600 = vld [vmem:[%s0 + $0x7c] sm:$0xf]
    %v601 = vld [vmem:[%s0 + $0x98] sm:$0xf]
    %v602 = vld [vmem:[%s0 + $0x9c] sm:$0xf]
    %v603 = vld [vmem:[%s0 + $0xb8] sm:$0xf]
    %v604 = vld [vmem:[%s0 + $0xbc] sm:$0xf]
    %v605 = vld [vmem:[%s0 + $0xd8] sm:$0xf]
    %v606 = vld [vmem:[%s0 + $0xdc] sm:$0xf]
    %v607 = vld [vmem:[%s0 + $0xf8] sm:$0xf]
    %v608 = vld [vmem:[%s0 + $0xfc] sm:$0xf]
    %v609 = vunpack.c.l.bf16 %v593
    %v610 = vunpack.c.l.bf16 %v594
    %v611 = vunpack.c.l.bf16 %v595
    %v612 = vunpack.c.l.bf16 %v596
    %v613 = vunpack.c.l.bf16 %v597
    %v614 = vunpack.c.l.bf16 %v598
    %v615 = vunpack.c.l.bf16 %v599
    %v616 = vunpack.c.l.bf16 %v600
    %v617 = vunpack.c.l.bf16 %v601
    %v618 = vunpack.c.l.bf16 %v602
    %v619 = vunpack.c.l.bf16 %v603
    %v620 = vunpack.c.l.bf16 %v604
    %v621 = vunpack.c.l.bf16 %v605
    %v622 = vunpack.c.l.bf16 %v606
    %v623 = vunpack.c.l.bf16 %v607
    %v624 = vunpack.c.l.bf16 %v608
    %v625 = vsel %vm56, %v609, -inf
    %v626 = vsel %vm56, %v610, -inf
    %v627 = vmax.f32 %v625, %v626
    %v628 = vrot.slane %v627, 4
    %v629 = vmax.f32 %v627, %v628
    %v630 = vrot.slane %v629, 2
    %v631 = vmax.f32 %v629, %v630
    %v632 = vrot.slane %v631, 1
    %v633 = vmax.f32 %v631, %v632
    %v634 = vsel %vm56, %v611, -inf
    %v635 = vsel %vm56, %v612, -inf
    %v636 = vmax.f32 %v634, %v635
    %v637 = vrot.slane %v636, 4
    %v638 = vmax.f32 %v636, %v637
    %v639 = vrot.slane %v638, 2
    %v640 = vmax.f32 %v638, %v639
    %v641 = vrot.slane %v640, 1
    %v642 = vmax.f32 %v640, %v641
    %v643 = vsel %vm56, %v613, -inf
    %v644 = vsel %vm56, %v614, -inf
    %v645 = vmax.f32 %v643, %v644
    %v646 = vrot.slane %v645, 4
    %v647 = vmax.f32 %v645, %v646
    %v648 = vrot.slane %v647, 2
    %v649 = vmax.f32 %v647, %v648
    %v650 = vrot.slane %v649, 1
    %v651 = vmax.f32 %v649, %v650
    %v652 = vsel %vm56, %v615, -inf
    %v653 = vsel %vm56, %v616, -inf
    %v654 = vmax.f32 %v652, %v653
    %v655 = vrot.slane %v654, 4
    %v656 = vmax.f32 %v654, %v655
    %v657 = vrot.slane %v656, 2
    %v658 = vmax.f32 %v656, %v657
    %v659 = vrot.slane %v658, 1
    %v660 = vmax.f32 %v658, %v659
    %v661 = vsel %vm56, %v617, -inf
    %v662 = vsel %vm56, %v618, -inf
    %v663 = vmax.f32 %v661, %v662
    %v664 = vrot.slane %v663, 4
    %v665 = vmax.f32 %v663, %v664
    %v666 = vrot.slane %v665, 2
    %v667 = vmax.f32 %v665, %v666
    %v668 = vrot.slane %v667, 1
    %v669 = vmax.f32 %v667, %v668
    %v670 = vsel %vm56, %v619, -inf
    %v671 = vsel %vm56, %v620, -inf
    %v672 = vmax.f32 %v670, %v671
    %v673 = vrot.slane %v672, 4
    %v674 = vmax.f32 %v672, %v673
    %v675 = vrot.slane %v674, 2
    %v676 = vmax.f32 %v674, %v675
    %v677 = vrot.slane %v676, 1
    %v678 = vmax.f32 %v676, %v677
    %v679 = vsel %vm56, %v621, -inf
    %v680 = vsel %vm56, %v622, -inf
    %v681 = vmax.f32 %v679, %v680
    %v682 = vrot.slane %v681, 4
    %v683 = vmax.f32 %v681, %v682
    %v684 = vrot.slane %v683, 2
    %v685 = vmax.f32 %v683, %v684
    %v686 = vrot.slane %v685, 1
    %v687 = vmax.f32 %v685, %v686
    %v688 = vsel %vm56, %v623, -inf
    %v689 = vsel %vm56, %v624, -inf
    %v690 = vmax.f32 %v688, %v689
    %v691 = vrot.slane %v690, 4
    %v692 = vmax.f32 %v690, %v691
    %v693 = vrot.slane %v692, 2
    %v694 = vmax.f32 %v692, %v693
    %v695 = vrot.slane %v694, 1
    %v696 = vmax.f32 %v694, %v695
    %v697 = vmax.f32 %v505, %v633
    %v698 = vmax.f32 %v506, %v642
    %v699 = vmax.f32 %v507, %v651
    %v700 = vmax.f32 %v508, %v660
    %v701 = vmax.f32 %v509, %v669
    %v702 = vmax.f32 %v510, %v678
    %v703 = vmax.f32 %v511, %v687
    %v704 = vmax.f32 %v512, %v696
    %v705 = vsel %vm56, %v609, 0.0
    %v706 = vsel %vm56, %v610, 0.0
    %v707 = vadd.f32 %v705, %v706
    %v708 = vrot.slane %v707, 4
    %v709 = vadd.f32 %v707, %v708
    %v710 = vrot.slane %v709, 2
    %v711 = vadd.f32 %v709, %v710
    %v712 = vrot.slane %v711, 1
    %v713 = vadd.f32 %v711, %v712
    %v714 = vsel %vm56, %v611, 0.0
    %v715 = vsel %vm56, %v612, 0.0
    %v716 = vadd.f32 %v714, %v715
    %v717 = vrot.slane %v716, 4
    %v718 = vadd.f32 %v716, %v717
    %v719 = vrot.slane %v718, 2
    %v720 = vadd.f32 %v718, %v719
    %v721 = vrot.slane %v720, 1
    %v722 = vadd.f32 %v720, %v721
    %v723 = vsel %vm56, %v613, 0.0
    %v724 = vsel %vm56, %v614, 0.0
    %v725 = vadd.f32 %v723, %v724
    %v726 = vrot.slane %v725, 4
    %v727 = vadd.f32 %v725, %v726
    %v728 = vrot.slane %v727, 2
    %v729 = vadd.f32 %v727, %v728
    %v730 = vrot.slane %v729, 1
    %v731 = vadd.f32 %v729, %v730
    %v732 = vsel %vm56, %v615, 0.0
    %v733 = vsel %vm56, %v616, 0.0
    %v734 = vadd.f32 %v732, %v733
    %v735 = vrot.slane %v734, 4
    %v736 = vadd.f32 %v734, %v735
    %v737 = vrot.slane %v736, 2
    %v738 = vadd.f32 %v736, %v737
    %v739 = vrot.slane %v738, 1
    %v740 = vadd.f32 %v738, %v739
    %v741 = vsel %vm56, %v617, 0.0
    %v742 = vsel %vm56, %v618, 0.0
    %v743 = vadd.f32 %v741, %v742
    %v744 = vrot.slane %v743, 4
    %v745 = vadd.f32 %v743, %v744
    %v746 = vrot.slane %v745, 2
    %v747 = vadd.f32 %v745, %v746
    %v748 = vrot.slane %v747, 1
    %v749 = vadd.f32 %v747, %v748
    %v750 = vsel %vm56, %v619, 0.0
    %v751 = vsel %vm56, %v620, 0.0
    %v752 = vadd.f32 %v750, %v751
    %v753 = vrot.slane %v752, 4
    %v754 = vadd.f32 %v752, %v753
    %v755 = vrot.slane %v754, 2
    %v756 = vadd.f32 %v754, %v755
    %v757 = vrot.slane %v756, 1
    %v758 = vadd.f32 %v756, %v757
    %v759 = vsel %vm56, %v621, 0.0
    %v760 = vsel %vm56, %v622, 0.0
    %v761 = vadd.f32 %v759, %v760
    %v762 = vrot.slane %v761, 4
    %v763 = vadd.f32 %v761, %v762
    %v764 = vrot.slane %v763, 2
    %v765 = vadd.f32 %v763, %v764
    %v766 = vrot.slane %v765, 1
    %v767 = vadd.f32 %v765, %v766
    %v768 = vsel %vm56, %v623, 0.0
    %v769 = vsel %vm56, %v624, 0.0
    %v770 = vadd.f32 %v768, %v769
    %v771 = vrot.slane %v770, 4
    %v772 = vadd.f32 %v770, %v771
    %v773 = vrot.slane %v772, 2
    %v774 = vadd.f32 %v772, %v773
    %v775 = vrot.slane %v774, 1
    %v776 = vadd.f32 %v774, %v775
    %v777 = vadd.f32 %v585, %v713
    %v778 = vadd.f32 %v586, %v722
    %v779 = vadd.f32 %v587, %v731
    %v780 = vadd.f32 %v588, %v740
    %v781 = vadd.f32 %v589, %v749
    %v782 = vadd.f32 %v590, %v758
    %v783 = vadd.f32 %v591, %v767
    %v784 = vadd.f32 %v592, %v776
    %v785 = vmul.f32 %v777, 0.015625
    %v786 = vmul.f32 %v778, 0.015625
    %v787 = vmul.f32 %v779, 0.015625
    %v788 = vmul.f32 %v780, 0.015625
    %v789 = vmul.f32 %v781, 0.015625
    %v790 = vmul.f32 %v782, 0.015625
    %v791 = vmul.f32 %v783, 0.015625
    %v792 = vmul.f32 %v784, 0.015625
    %v793 = vld [vmem:[%s1] sm:$0xff]
    %v794 = vld [vmem:[%s1 + $0x8] sm:$0xff]
    %v795 = vld [vmem:[%s1 + $0x10] sm:$0xff]
    %v796 = vld [vmem:[%s1 + $0x18] sm:$0xff]
    %v797 = vld [vmem:[%s2] sm:$0xff]
    %v798 = vld [vmem:[%s2 + $0x8] sm:$0xff]
    %v799 = vld [vmem:[%s2 + $0x10] sm:$0xff]
    %v800 = vld [vmem:[%s2 + $0x18] sm:$0xff]
    %vm809 = vcmask 1041409
    %v810 = vsel %vm809, %v786, %v785
    %vm811 = vcmask 1042434
    %v812 = vsel %vm811, %v787, %v810
    %vm813 = vcmask 1043459
    %v814 = vsel %vm813, %v788, %v812
    %vm815 = vcmask 1044484
    %v816 = vsel %vm815, %v789, %v814
    %vm817 = vcmask 1045509
    %v818 = vsel %vm817, %v790, %v816
    %vm819 = vcmask 1046534
    %v820 = vsel %vm819, %v791, %v818
    %vm821 = vcmask 1047559
    %v822 = vsel %vm821, %v792, %v820
    %v823 = vsel %vm56, %v822, 0
    %825 = vmatpush.msra.mxu0 0.0
    %826 = vmatpush.msra.mxu0 0.0
    %827 = vmatpush.msra.mxu0 0.0
    %828 = vmatpush.msra.mxu0 0.0
    %829 = vmatpush.msra.mxu0 0.0
    %830 = vmatpush.msra.mxu0 0.0
    %831 = vmatpush.msra.mxu0 0.0
    %832 = vmatpush.msra.mxu0 0.0
    %833 = vmatpush.msra.mxu0 0.0
    %834 = vmatpush.msra.mxu0 0.0
    %835 = vmatpush.msra.mxu0 0.0
    %836 = vmatpush.msra.mxu0 0.0
    %837 = vmatpush.msra.mxu0 %v800
    %838 = vmatpush.msra.mxu0 %v799
    %839 = vmatpush.msra.mxu0 %v798
    %840 = vmatpush.msra.mxu0 %v797
    %841 = vmatmul.f32.gmra.mxu0 %v823
    %v842 = vpop.f32.mrf.mxu0
    %v843 = vadd.f32 0.0, %v842
    %844 = vdwg.mxu0
    %v853 = vsel %vm809, %v698, %v697
    %v854 = vsel %vm811, %v699, %v853
    %v855 = vsel %vm813, %v700, %v854
    %v856 = vsel %vm815, %v701, %v855
    %v857 = vsel %vm817, %v702, %v856
    %v858 = vsel %vm819, %v703, %v857
    %v859 = vsel %vm821, %v704, %v858
    %v860 = vsel %vm56, %v859, 0
    %862 = vmatpush.msra.mxu0 0.0
    %863 = vmatpush.msra.mxu0 0.0
    %864 = vmatpush.msra.mxu0 0.0
    %865 = vmatpush.msra.mxu0 0.0
    %866 = vmatpush.msra.mxu0 0.0
    %867 = vmatpush.msra.mxu0 0.0
    %868 = vmatpush.msra.mxu0 0.0
    %869 = vmatpush.msra.mxu0 0.0
    %870 = vmatpush.msra.mxu0 0.0
    %871 = vmatpush.msra.mxu0 0.0
    %872 = vmatpush.msra.mxu0 0.0
    %873 = vmatpush.msra.mxu0 0.0
    %874 = vmatpush.msra.mxu0 %v796
    %875 = vmatpush.msra.mxu0 %v795
    %876 = vmatpush.msra.mxu0 %v794
    %877 = vmatpush.msra.mxu0 %v793
    %878 = vmatmul.f32.gmra.mxu0 %v860
    %v879 = vpop.f32.mrf.mxu0
    %v880 = vadd.f32 %v843, %v879
    %881 = vdwg.mxu0
    %v882 = vld [vmem:[%s3] sm:$0x1]
    %v884 = vperm.slane %v882, 0
    %v886 = vadd.f32 %v880, %v884
    %v887 = vmax.f32 %v886, 0.0
    %v888 = vld [vmem:[%s4] sm:$0xff]
    %v889 = vld [vmem:[%s4 + $0x8] sm:$0xff]
    %v890 = vld [vmem:[%s4 + $0x10] sm:$0xff]
    %v891 = vld [vmem:[%s4 + $0x18] sm:$0xff]
    %v892 = vld [vmem:[%s5] sm:$0x1]
    %v894 = vperm.slane %v892, 0
    %v897 = vsel %vm56, %v887, 0
    %899 = vmatpush.msra.mxu0 0.0
    %900 = vmatpush.msra.mxu0 0.0
    %901 = vmatpush.msra.mxu0 0.0
    %902 = vmatpush.msra.mxu0 0.0
    %903 = vmatpush.msra.mxu0 0.0
    %904 = vmatpush.msra.mxu0 0.0
    %905 = vmatpush.msra.mxu0 0.0
    %906 = vmatpush.msra.mxu0 0.0
    %907 = vmatpush.msra.mxu0 0.0
    %908 = vmatpush.msra.mxu0 0.0
    %909 = vmatpush.msra.mxu0 0.0
    %910 = vmatpush.msra.mxu0 0.0
    %911 = vmatpush.msra.mxu0 %v891
    %912 = vmatpush.msra.mxu0 %v890
    %913 = vmatpush.msra.mxu0 %v889
    %914 = vmatpush.msra.mxu0 %v888
    %915 = vmatmul.f32.gmra.mxu0 %v897
    %v916 = vpop.f32.mrf.mxu0
    %v917 = vadd.f32 %v894, %v916
    %918 = vdwg.mxu0
    %919 = vst [vmem:[#allocation2] sm:$0xff] %v917
    // Predicated region
    $region26: #{tpu_custom_call.1} parent=1 // pred_check
      _
    $region27: #{tpu_custom_call.1} parent=1 // pred_check_branch
      %921 = sbr.rel (0) target = $region29
    $region28: #{tpu_custom_call.1} parent=1 // pred_region
      %923 = vsyncadd [#allocation3], 0
      %s925 = sshll.u32 [#allocation2], 4
      %s926 = int_to_ptr.vmem [resolvable:$true] %s925
      %s927 = sshll.u32 %s6, 4
      %s928 = int_to_ptr.hbm [resolvable:$true] %s927
      %930 = dma.vmem_to_hbm [thread:$0]  %s926, 128, %s928, [#allocation3]
    $region29: #{tpu_custom_call.1} parent=1 // pred_fallthru
      _
    // Predicated region
    $region30: #{tpu_custom_call.1} parent=1 // pred_check
      _
    $region31: #{tpu_custom_call.1} parent=1 // pred_check_branch
      %932 = sbr.rel (0) target = $region33
    $region32: #{tpu_custom_call.1} parent=1 // pred_region
      %934 = dma.done [#allocation3], 128
    $region33: #{tpu_custom_call.1} parent=1 // pred_fallthru
      _
    %935 = vsyncpa [#allocation3], 1

</llo_original>
